<compile_context>
chip_gen: v7x
topology: tpu7x:2x2x1
jax: 0.10.0
libtpu: 0.0.40
codegen_flags: <defaults>
</compile_context>

<pallas_src>
import functools
import inspect

import jax
import jax.numpy as jnp
from jax import lax
from jax.experimental import pallas as pl
from jax.experimental.pallas import tpu as pltpu


# ----------------------------------------------------------------------------
# Kernel
# ----------------------------------------------------------------------------
def _token_attn_kernel(x_ref, mask_ref, wqv_ref, bqv_ref, expand_ref,
                       wo_ref, bo_ref, gamma_ref, beta_ref, o_ref,
                       *, head_num, all_dim, eps, approx_recip):
    """Fully fused forward for one (TM, T, H) slab -> (TM, H) output."""
    tm, t_num, hidden = x_ref.shape
    cd = x_ref.dtype                                  # MXU operand dtype (bf16/f32)

    x = x_ref[...]                                    # (TM, T, H)
    xm = x.reshape(tm * t_num, hidden)                # leading-dim merge (free)

    # Fused q|v projection against the pre-transposed (H, Ppad) weight.
    # Columns [0, all_dim) = v, [all_dim, all_dim+head_num) = q, rest = padding.
    qv = jnp.dot(xm, wqv_ref[...], preferred_element_type=jnp.float32)
    qv = qv + bqv_ref[...]                            # bias add in f32
    v = qv[:, :all_dim]                               # (TM*T, all_dim), lane-aligned
    q = qv[:, all_dim:all_dim + head_num]             # (TM*T, head_num)

    # Token-axis softmax with the pre-scaled additive mask (already -10000*mask).
    q3 = q.reshape(tm, t_num, head_num)
    scores = q3 + mask_ref[...].astype(jnp.float32)   # (TM, T, head_num)
    m = jnp.max(scores, axis=1, keepdims=True)
    e = jnp.exp(scores - m)                           # unnormalized weights
    denom = jnp.sum(e, axis=1)                        # (TM, head_num)
    # (attention_dropout: identity in eval mode)

    # Expand heads -> all_dim with the precomputed 0/1 matrix (tiny MXU matmuls):
    #   a_flat[n, h*head_dim + d] = e[n, h]
    a_flat = jnp.dot(e.reshape(tm * t_num, head_num).astype(cd), expand_ref[...],
                     preferred_element_type=jnp.float32)        # (TM*T, all_dim)
    num = jnp.sum(a_flat.reshape(tm, t_num, all_dim)
                  * v.reshape(tm, t_num, all_dim), axis=1)      # (TM, all_dim)
    denom_exp = jnp.dot(denom.astype(cd), expand_ref[...],
                        preferred_element_type=jnp.float32)     # (TM, all_dim)
    # Deferred softmax normalization: one small reciprocal + multiply instead of
    # a (TM, T, head_num) divide per grid step.
    res = num * pl.reciprocal(denom_exp, approx=approx_recip)

    # Output projection + LayerNorm epilogue (all f32).
    out = jnp.dot(res.astype(cd), wo_ref[...], preferred_element_type=jnp.float32)
    out = out + bo_ref[...]
    # (dropout: identity in eval mode)
    mu = jnp.mean(out, axis=-1, keepdims=True)
    var = jnp.mean(jnp.square(out - mu), axis=-1, keepdims=True)
    out = (out - mu) * lax.rsqrt(var + jnp.float32(eps))
    out = out * gamma_ref[...] + beta_ref[...]
    o_ref[...] = out.astype(o_ref.dtype)


# ----------------------------------------------------------------------------
# Wrapper helpers
# ----------------------------------------------------------------------------
def _round_up(x, m):
    return (x + m - 1) // m * m


def _supports_single_buffered_consts():
    if not hasattr(pl, "Buffered"):
        return False
    try:
        return "pipeline_mode" in inspect.signature(pl.BlockSpec).parameters
    except (TypeError, ValueError):
        return False


_SINGLE_BUFFER_OK = _supports_single_buffered_consts()


def _tile_config(rows, T, H, Ppad, compute_dtype, max_tile=1024):
    """Chip-aware (TM, vmem_limit_bytes): big tiles on 128 MiB parts (v5e/v6e),
    conservative on 64 MiB v7x; >=2 grid steps whenever the problem allows."""
    in_b = jnp.dtype(compute_dtype).itemsize
    try:
        vmem_cap = int(pltpu.get_tpu_info().vmem_capacity_bytes)
    except Exception:  # pragma: no cover - be safe on any query failure
        vmem_cap = 64 * 1024 * 1024          # assume smallest (v7x-class) VMEM
    vmem_limit = int(min(max(vmem_cap - (8 << 20), 24 << 20), 100 << 20))

    t_pad = _round_up(T, 8)
    per_row = (2 * T * H * in_b              # double-buffered activation block
               + 2 * t_pad * 128 * in_b      # mask block (lane-padded to 128)
               + 4 * T * Ppad * 4            # f32 intermediates (qv, e/a_flat, a*v)
               + 8 * H * 4)                  # row-level f32 temporaries
    budget = int(0.6 * vmem_limit)           # headroom for weights + slack

    tm = min(max_tile, max(8, budget // per_row))
    tm = max(8, (tm // 8) * 8)
    if rows >= 16:                           # keep >=2 grid steps (v7x: 2 cores)
        tm = min(tm, _round_up((rows + 1) // 2, 8))
    tm = min(tm, _round_up(rows, 8))
    return max(8, tm), vmem_limit


# ----------------------------------------------------------------------------
# Public forward
# ----------------------------------------------------------------------------
def mhsta_forward(hidden_states, mask, wq, bq, wv, bv, wo, bo, gamma, beta,
                  *, head_num, eps=1e-5, compute_dtype=jnp.bfloat16,
                  max_row_tile=1024):
    """hidden_states: (B, S, T, H); mask: (B, S, T) with 1 = suppress token.
    Weights are given in PyTorch (out, in) layout; they are transposed / fused /
    cast once here (one-time host prep, amortized across calls)."""
    B, S, T, H = hidden_states.shape
    head_dim = H // head_num
    all_dim = head_num * head_dim
    P = all_dim + head_num
    Ppad = _round_up(P, 128)
    rows = B * S

    cd = jnp.dtype(compute_dtype)
    f32 = jnp.float32
    approx_recip = bool(cd != jnp.dtype(jnp.float32))
    out_dtype = hidden_states.dtype

    # --- one-time weight prep: transpose to (in, out), fuse [v|q], pad to 128 ---
    wqv_t = jnp.concatenate([wv.T, wq.T], axis=1).astype(cd)        # (H, P)
    wqv_t = jnp.pad(wqv_t, ((0, 0), (0, Ppad - P)))                 # (H, Ppad)
    bqv = jnp.pad(jnp.concatenate([bv, bq]).astype(f32),
                  (0, Ppad - P)).reshape(1, Ppad)                   # f32 bias
    wo_t = wo.T.astype(cd)                                          # (all_dim, H)
    bo2 = bo.astype(f32).reshape(1, H)
    gamma2 = gamma.astype(f32).reshape(1, H)
    beta2 = beta.astype(f32).reshape(1, H)

    # 0/1 head -> all_dim expansion matrix (resident VMEM input).
    col_head = jnp.arange(all_dim, dtype=jnp.int32) // head_dim
    expand = (col_head[None, :]
              == jnp.arange(head_num, dtype=jnp.int32)[:, None]).astype(cd)

    # --- activations: flatten (B,S), cast once, pre-scale the mask ---
    x2 = hidden_states.reshape(rows, T, H).astype(cd)
    m2 = (mask.astype(f32) * jnp.float32(-10000.0)).reshape(rows, T, 1).astype(cd)

    # --- tiling: pad rows to a multiple of the chosen tile (no giant-block path) ---
    tm, vmem_limit = _tile_config(rows, T, H, Ppad, cd, max_tile=max_row_tile)
    rows_p = _round_up(rows, tm)
    if rows_p != rows:
        pad = rows_p - rows
        x2 = jnp.pad(x2, ((0, pad), (0, 0), (0, 0)))
        m2 = jnp.pad(m2, ((0, pad), (0, 0), (0, 0)))
    grid = (rows_p // tm,)

    kernel = functools.partial(_token_attn_kernel, head_num=head_num,
                               all_dim=all_dim, eps=eps,
                               approx_recip=approx_recip)

    def run(single_buffer_consts):
        def const_spec(shape):
            idx = lambda i, _s=shape: (0,) * len(_s)
            if single_buffer_consts:
                return pl.BlockSpec(shape, idx, pipeline_mode=pl.Buffered(1))
            return pl.BlockSpec(shape, idx)

        in_specs = [
            pl.BlockSpec((tm, T, H), lambda i: (i, 0, 0)),   # activations (pipelined)
            pl.BlockSpec((tm, T, 1), lambda i: (i, 0, 0)),   # pre-scaled mask
            const_spec((H, Ppad)),                           # fused Wv|Wq (resident)
            const_spec((1, Ppad)),                           # fused bias (f32)
            const_spec((head_num, all_dim)),                 # expand matrix
            const_spec((all_dim, H)),                        # Wo^T (resident)
            const_spec((1, H)),                              # bo
            const_spec((1, H)),                              # LN gamma
            const_spec((1, H)),                              # LN beta
        ]
        return pl.pallas_call(
            kernel,
            out_shape=jax.ShapeDtypeStruct((rows_p, H), out_dtype),
            grid_spec=pltpu.PrefetchScalarGridSpec(
                num_scalar_prefetch=0,
                grid=grid,
                in_specs=in_specs,
                out_specs=pl.BlockSpec((tm, H), lambda i: (i, 0)),  # lane-dense out
            ),
            compiler_params=pltpu.CompilerParams(
                dimension_semantics=("parallel",),
                vmem_limit_bytes=vmem_limit,
            ),
        )(x2, m2, wqv_t, bqv, expand, wo_t, bo2, gamma2, beta2)

    if _SINGLE_BUFFER_OK:
        try:
            out = run(True)
        except Exception:  # pragma: no cover - fall back to default buffering
            out = run(False)
    else:
        out = run(False)

    return out[:rows].reshape(B, S, H)


# ----------------------------------------------------------------------------
# Pure-JAX reference (HIGHEST precision) mirroring the PyTorch module
# ----------------------------------------------------------------------------
def reference_forward(x, mask, wq, bq, wv, bv, wo, bo, gamma, beta,
                      *, head_num, eps=1e-5):
    B, S, T, H = x.shape
    hd = H // head_num
    prec = jax.lax.Precision.HIGHEST
    q = jnp.einsum('bsth,kh->bstk', x, wq, precision=prec) + bq
    v = jnp.einsum('bsth,kh->bstk', x, wv, precision=prec) + bv
    scores = q + mask[..., None] * -10000.0
    alpha = jax.nn.softmax(scores, axis=2)
    v4 = v.reshape(B, S, T, head_num, hd)
    res = jnp.einsum('bsth,bsthd->bshd', alpha, v4,
                     precision=prec).reshape(B, S, head_num * hd)
    out = jnp.einsum('bsa,ha->bsh', res, wo, precision=prec) + bo
    mu = out.mean(-1, keepdims=True)
    var = jnp.mean((out - mu) ** 2, axis=-1, keepdims=True)
    out = (out - mu) * jax.lax.rsqrt(var + eps)
    return out * gamma + beta


if __name__ == "__main__":
    key = jax.random.PRNGKey(0)
    keys = jax.random.split(key, 8)

    # Small shapes consistent with the module: batch=2, sent_num=3, token_num=8,
    # hidden=32, num_attention_heads=4 -> head_dim=8, all_dim=32.
    B, S, T, H = 2, 3, 8, 32
    head_num = 4
    all_dim = H

    x = jax.random.normal(keys[0], (B, S, T, H), jnp.float32)
    mask = (jax.random.uniform(keys[1], (B, S, T)) < 0.3).astype(jnp.float32)  # 1 = masked

    def lin_init(k, out_f, in_f):
        bound = 1.0 / jnp.sqrt(jnp.float32(in_f))
        kw, kb = jax.random.split(k)
        w = jax.random.uniform(kw, (out_f, in_f), jnp.float32, -bound, bound)
        b = jax.random.uniform(kb, (out_f,), jnp.float32, -bound, bound)
        return w, b

    wq, bq = lin_init(keys[2], head_num, H)      # Linear(H -> head_num)
    wv, bv = lin_init(keys[3], all_dim, H)       # Linear(H -> all_dim)
    wo, bo = lin_init(keys[4], H, all_dim)       # Linear(all_dim -> H)
    gamma = 1.0 + 0.1 * jax.random.normal(keys[5], (H,), jnp.float32)
    beta = 0.1 * jax.random.normal(keys[6], (H,), jnp.float32)

    args = (x, mask, wq, bq, wv, bv, wo, bo, gamma, beta)
    ref = reference_forward(*args, head_num=head_num)

    # High-precision mode (f32 MXU operands, exact reciprocal): tight check.
    out_f32 = jax.block_until_ready(
        mhsta_forward(*args, head_num=head_num, compute_dtype=jnp.float32))
    assert out_f32.shape == (B, S, H)
    d32 = float(jnp.max(jnp.abs(out_f32 - ref)))
    assert jnp.allclose(out_f32, ref, atol=1e-3, rtol=1e-3), \
        f"f32 path mismatch vs reference, max diff {d32}"

    # Default performance mode (bf16 MXU operands, f32 accumulation/softmax/LN):
    # looser check — precision loss is inherent to the bf16 operand path.
    out_bf16 = jax.block_until_ready(mhsta_forward(*args, head_num=head_num))
    assert out_bf16.shape == (B, S, H)
    d16 = float(jnp.max(jnp.abs(out_bf16 - ref)))
    assert jnp.allclose(out_bf16, ref, atol=1e-1, rtol=1e-1), \
        f"bf16 path mismatch vs reference, max diff {d16}"

    print("KERNEL_OK")
</pallas_src>

<mosaic_0001>
module attributes {stable_mosaic.version = 11 : i64} {
  func.func @_token_attn_kernel(%arg0: i32, %arg1: memref<8x8x32xf32, #tpu.memory_space<vmem>>, %arg2: memref<8x8x1xf32, #tpu.memory_space<vmem>>, %arg3: memref<32x128xf32, #tpu.memory_space<vmem>>, %arg4: memref<1x128xf32, #tpu.memory_space<vmem>>, %arg5: memref<4x32xf32, #tpu.memory_space<vmem>>, %arg6: memref<32x32xf32, #tpu.memory_space<vmem>>, %arg7: memref<1x32xf32, #tpu.memory_space<vmem>>, %arg8: memref<1x32xf32, #tpu.memory_space<vmem>>, %arg9: memref<1x32xf32, #tpu.memory_space<vmem>>, %arg10: memref<8x32xf32, #tpu.memory_space<vmem>>) attributes {dimension_semantics = [#tpu.dimension_semantics<parallel>], iteration_bounds = array<i64: 1>, scalar_prefetch = 0 : i64, scratch_operands = 0 : i64, tpu.core_type = #tpu.core_type<tc>, window_params = [{transform_indices = @transform_0, window_bounds = array<i64: 8, 8, 32>}, {transform_indices = @transform_1, window_bounds = array<i64: 8, 8, 1>}, {pipeline_mode = #tpu.pipeline_mode<synchronous>, transform_indices = @transform_2, window_bounds = array<i64: 32, 128>}, {pipeline_mode = #tpu.pipeline_mode<synchronous>, transform_indices = @transform_3, window_bounds = array<i64: 1, 128>}, {pipeline_mode = #tpu.pipeline_mode<synchronous>, transform_indices = @transform_4, window_bounds = array<i64: 4, 32>}, {pipeline_mode = #tpu.pipeline_mode<synchronous>, transform_indices = @transform_5, window_bounds = array<i64: 32, 32>}, {pipeline_mode = #tpu.pipeline_mode<synchronous>, transform_indices = @transform_6, window_bounds = array<i64: 1, 32>}, {pipeline_mode = #tpu.pipeline_mode<synchronous>, transform_indices = @transform_7, window_bounds = array<i64: 1, 32>}, {pipeline_mode = #tpu.pipeline_mode<synchronous>, transform_indices = @transform_8, window_bounds = array<i64: 1, 32>}, {transform_indices = @transform_9, window_bounds = array<i64: 8, 32>}]} {
    %c0 = arith.constant 0 : index
    %c0_0 = arith.constant 0 : index
    %c0_1 = arith.constant 0 : index
    %0 = vector.load %arg1[%c0, %c0_0, %c0_1] : memref<8x8x32xf32, #tpu.memory_space<vmem>>, vector<8x8x32xf32>
    %1 = vector.shape_cast %0 : vector<8x8x32xf32> to vector<64x32xf32>
    %c0_2 = arith.constant 0 : index
    %c0_3 = arith.constant 0 : index
    %2 = vector.load %arg3[%c0_2, %c0_3] : memref<32x128xf32, #tpu.memory_space<vmem>>, vector<32x128xf32>
    %cst = arith.constant dense<0.000000e+00> : vector<64x128xf32>
    %3 = tpu.matmul %1, %2, %cst {dimension_numbers = #tpu.dot_dimension_numbers<[1], [0], [0], [1], [0, 0, 1, 1], [], []>} : vector<64x32xf32>, vector<32x128xf32>, vector<64x128xf32> -> vector<64x128xf32>
    %c0_4 = arith.constant 0 : index
    %c0_5 = arith.constant 0 : index
    %4 = vector.load %arg4[%c0_4, %c0_5] : memref<1x128xf32, #tpu.memory_space<vmem>>, vector<1x128xf32>
    %5 = vector.broadcast %4 : vector<1x128xf32> to vector<64x128xf32>
    %6 = arith.addf %3, %5 : vector<64x128xf32>
    %7 = vector.extract_strided_slice %6 {offsets = [0, 0], sizes = [64, 32], strides = [1, 1]} : vector<64x128xf32> to vector<64x32xf32>
    %8 = vector.extract_strided_slice %6 {offsets = [0, 32], sizes = [64, 4], strides = [1, 1]} : vector<64x128xf32> to vector<64x4xf32>
    %9 = vector.shape_cast %8 : vector<64x4xf32> to vector<8x8x4xf32>
    %c0_6 = arith.constant 0 : index
    %c0_7 = arith.constant 0 : index
    %c0_8 = arith.constant 0 : index
    %10 = vector.load %arg2[%c0_6, %c0_7, %c0_8] : memref<8x8x1xf32, #tpu.memory_space<vmem>>, vector<8x8x1xf32>
    %11 = vector.broadcast %10 : vector<8x8x1xf32> to vector<8x8x4xf32>
    %12 = arith.addf %9, %11 : vector<8x8x4xf32>
    %cst_9 = arith.constant dense<0xFF800000> : vector<8x4xf32>
    %13 = vector.multi_reduction <maximumf>, %12, %cst_9 [1] : vector<8x8x4xf32> to vector<8x4xf32>
    %14 = vector.shape_cast %13 : vector<8x4xf32> to vector<8x1x4xf32>
    %15 = vector.broadcast %14 : vector<8x1x4xf32> to vector<8x8x4xf32>
    %16 = arith.subf %12, %15 : vector<8x8x4xf32>
    %17 = math.exp %16 : vector<8x8x4xf32>
    %cst_10 = arith.constant dense<0.000000e+00> : vector<8x4xf32>
    %18 = vector.multi_reduction <add>, %17, %cst_10 [1] : vector<8x8x4xf32> to vector<8x4xf32>
    %19 = vector.shape_cast %17 : vector<8x8x4xf32> to vector<64x4xf32>
    %c0_11 = arith.constant 0 : index
    %c0_12 = arith.constant 0 : index
    %20 = vector.load %arg5[%c0_11, %c0_12] : memref<4x32xf32, #tpu.memory_space<vmem>>, vector<4x32xf32>
    %cst_13 = arith.constant dense<0.000000e+00> : vector<64x32xf32>
    %21 = tpu.matmul %19, %20, %cst_13 {dimension_numbers = #tpu.dot_dimension_numbers<[1], [0], [0], [1], [0, 0, 1, 1], [], []>} : vector<64x4xf32>, vector<4x32xf32>, vector<64x32xf32> -> vector<64x32xf32>
    %22 = vector.shape_cast %21 : vector<64x32xf32> to vector<8x8x32xf32>
    %23 = vector.shape_cast %7 : vector<64x32xf32> to vector<8x8x32xf32>
    %24 = arith.mulf %22, %23 : vector<8x8x32xf32>
    %cst_14 = arith.constant dense<0.000000e+00> : vector<8x32xf32>
    %25 = vector.multi_reduction <add>, %24, %cst_14 [1] : vector<8x8x32xf32> to vector<8x32xf32>
    %c0_15 = arith.constant 0 : index
    %c0_16 = arith.constant 0 : index
    %26 = vector.load %arg5[%c0_15, %c0_16] : memref<4x32xf32, #tpu.memory_space<vmem>>, vector<4x32xf32>
    %cst_17 = arith.constant dense<0.000000e+00> : vector<8x32xf32>
    %27 = tpu.matmul %18, %26, %cst_17 {dimension_numbers = #tpu.dot_dimension_numbers<[1], [0], [0], [1], [0, 0, 1, 1], [], []>} : vector<8x4xf32>, vector<4x32xf32>, vector<8x32xf32> -> vector<8x32xf32>
    %28 = tpu.reciprocal %27 : vector<8x32xf32> -> vector<8x32xf32>
    %29 = arith.mulf %25, %28 : vector<8x32xf32>
    %c0_18 = arith.constant 0 : index
    %c0_19 = arith.constant 0 : index
    %30 = vector.load %arg6[%c0_18, %c0_19] : memref<32x32xf32, #tpu.memory_space<vmem>>, vector<32x32xf32>
    %cst_20 = arith.constant dense<0.000000e+00> : vector<8x32xf32>
    %31 = tpu.matmul %29, %30, %cst_20 {dimension_numbers = #tpu.dot_dimension_numbers<[1], [0], [0], [1], [0, 0, 1, 1], [], []>} : vector<8x32xf32>, vector<32x32xf32>, vector<8x32xf32> -> vector<8x32xf32>
    %c0_21 = arith.constant 0 : index
    %c0_22 = arith.constant 0 : index
    %32 = vector.load %arg7[%c0_21, %c0_22] : memref<1x32xf32, #tpu.memory_space<vmem>>, vector<1x32xf32>
    %33 = vector.broadcast %32 : vector<1x32xf32> to vector<8x32xf32>
    %34 = arith.addf %31, %33 : vector<8x32xf32>
    %cst_23 = arith.constant dense<0.000000e+00> : vector<8xf32>
    %35 = vector.multi_reduction <add>, %34, %cst_23 [1] : vector<8x32xf32> to vector<8xf32>
    %36 = vector.shape_cast %35 : vector<8xf32> to vector<8x1xf32>
    %cst_24 = arith.constant 3.200000e+01 : f32
    %37 = vector.broadcast %cst_24 : f32 to vector<8x1xf32>
    %38 = arith.divf %36, %37 : vector<8x1xf32>
    %39 = vector.broadcast %38 : vector<8x1xf32> to vector<8x32xf32>
    %40 = arith.subf %34, %39 : vector<8x32xf32>
    %41 = arith.mulf %40, %40 : vector<8x32xf32>
    %cst_25 = arith.constant dense<0.000000e+00> : vector<8xf32>
    %42 = vector.multi_reduction <add>, %41, %cst_25 [1] : vector<8x32xf32> to vector<8xf32>
    %43 = vector.shape_cast %42 : vector<8xf32> to vector<8x1xf32>
    %cst_26 = arith.constant 3.200000e+01 : f32
    %44 = vector.broadcast %cst_26 : f32 to vector<8x1xf32>
    %45 = arith.divf %43, %44 : vector<8x1xf32>
    %46 = vector.broadcast %38 : vector<8x1xf32> to vector<8x32xf32>
    %47 = arith.subf %34, %46 : vector<8x32xf32>
    %cst_27 = arith.constant 9.99999974E-6 : f32
    %48 = vector.broadcast %cst_27 : f32 to vector<8x1xf32>
    %49 = arith.addf %45, %48 : vector<8x1xf32>
    %50 = math.rsqrt %49 : vector<8x1xf32>
    %51 = vector.broadcast %50 : vector<8x1xf32> to vector<8x32xf32>
    %52 = arith.mulf %47, %51 : vector<8x32xf32>
    %c0_28 = arith.constant 0 : index
    %c0_29 = arith.constant 0 : index
    %53 = vector.load %arg8[%c0_28, %c0_29] : memref<1x32xf32, #tpu.memory_space<vmem>>, vector<1x32xf32>
    %54 = vector.broadcast %53 : vector<1x32xf32> to vector<8x32xf32>
    %55 = arith.mulf %52, %54 : vector<8x32xf32>
    %c0_30 = arith.constant 0 : index
    %c0_31 = arith.constant 0 : index
    %56 = vector.load %arg9[%c0_30, %c0_31] : memref<1x32xf32, #tpu.memory_space<vmem>>, vector<1x32xf32>
    %57 = vector.broadcast %56 : vector<1x32xf32> to vector<8x32xf32>
    %58 = arith.addf %55, %57 : vector<8x32xf32>
    %c0_32 = arith.constant 0 : index
    %c0_33 = arith.constant 0 : index
    %59 = vector.load %arg10[%c0_32, %c0_33] : memref<8x32xf32, #tpu.memory_space<vmem>>, vector<8x32xf32>
    tpu.vector_store %arg10[%c0_32, %c0_33], %58 {strides = array<i32>} : memref<8x32xf32, #tpu.memory_space<vmem>>, vector<8x32xf32>,
    return
  }
  func.func @transform_0(%arg0: i32) -> (i32, i32, i32) {
    %c0_i32 = arith.constant 0 : i32
    %c0_i32_0 = arith.constant 0 : i32
    %c0_i32_1 = arith.constant 0 : i32
    return %arg0, %c0_i32, %c0_i32_0 : i32, i32, i32
  }
  func.func @transform_1(%arg0: i32) -> (i32, i32, i32) {
    %c0_i32 = arith.constant 0 : i32
    %c0_i32_0 = arith.constant 0 : i32
    %c0_i32_1 = arith.constant 0 : i32
    return %arg0, %c0_i32, %c0_i32_0 : i32, i32, i32
  }
  func.func @transform_2(%arg0: i32) -> (i32, i32) {
    %c0_i32 = arith.constant 0 : i32
    %c0_i32_0 = arith.constant 0 : i32
    %c0_i32_1 = arith.constant 0 : i32
    return %c0_i32, %c0_i32_0 : i32, i32
  }
  func.func @transform_3(%arg0: i32) -> (i32, i32) {
    %c0_i32 = arith.constant 0 : i32
    %c0_i32_0 = arith.constant 0 : i32
    %c0_i32_1 = arith.constant 0 : i32
    return %c0_i32, %c0_i32_0 : i32, i32
  }
  func.func @transform_4(%arg0: i32) -> (i32, i32) {
    %c0_i32 = arith.constant 0 : i32
    %c0_i32_0 = arith.constant 0 : i32
    %c0_i32_1 = arith.constant 0 : i32
    return %c0_i32, %c0_i32_0 : i32, i32
  }
  func.func @transform_5(%arg0: i32) -> (i32, i32) {
    %c0_i32 = arith.constant 0 : i32
    %c0_i32_0 = arith.constant 0 : i32
    %c0_i32_1 = arith.constant 0 : i32
    return %c0_i32, %c0_i32_0 : i32, i32
  }
  func.func @transform_6(%arg0: i32) -> (i32, i32) {
    %c0_i32 = arith.constant 0 : i32
    %c0_i32_0 = arith.constant 0 : i32
    %c0_i32_1 = arith.constant 0 : i32
    return %c0_i32, %c0_i32_0 : i32, i32
  }
  func.func @transform_7(%arg0: i32) -> (i32, i32) {
    %c0_i32 = arith.constant 0 : i32
    %c0_i32_0 = arith.constant 0 : i32
    %c0_i32_1 = arith.constant 0 : i32
    return %c0_i32, %c0_i32_0 : i32, i32
  }
  func.func @transform_8(%arg0: i32) -> (i32, i32) {
    %c0_i32 = arith.constant 0 : i32
    %c0_i32_0 = arith.constant 0 : i32
    %c0_i32_1 = arith.constant 0 : i32
    return %c0_i32, %c0_i32_0 : i32, i32
  }
  func.func @transform_9(%arg0: i32) -> (i32, i32) {
    %c0_i32 = arith.constant 0 : i32
    %c0_i32_0 = arith.constant 0 : i32
    return %arg0, %c0_i32 : i32, i32
  }
}

module attributes {stable_mosaic.version = 11 : i64} {
  func.func @_token_attn_kernel(%arg0: i32, %arg1: memref<8x8x32xf32, #tpu.memory_space<vmem>>, %arg2: memref<8x8x1xf32, #tpu.memory_space<vmem>>, %arg3: memref<32x128xf32, #tpu.memory_space<vmem>>, %arg4: memref<1x128xf32, #tpu.memory_space<vmem>>, %arg5: memref<4x32xf32, #tpu.memory_space<vmem>>, %arg6: memref<32x32xf32, #tpu.memory_space<vmem>>, %arg7: memref<1x32xf32, #tpu.memory_space<vmem>>, %arg8: memref<1x32xf32, #tpu.memory_space<vmem>>, %arg9: memref<1x32xf32, #tpu.memory_space<vmem>>, %arg10: memref<8x32xf32, #tpu.memory_space<vmem>>) attributes {dimension_semantics = [#tpu.dimension_semantics<parallel>], iteration_bounds = array<i64: 1>, scalar_prefetch = 0 : i64, scratch_operands = 0 : i64, tpu.core_type = #tpu.core_type<tc>, window_params = [{transform_indices = @transform_0, window_bounds = array<i64: 8, 8, 32>}, {transform_indices = @transform_1, window_bounds = array<i64: 8, 8, 1>}, {pipeline_mode = #tpu.pipeline_mode<synchronous>, transform_indices = @transform_2, window_bounds = array<i64: 32, 128>}, {pipeline_mode = #tpu.pipeline_mode<synchronous>, transform_indices = @transform_3, window_bounds = array<i64: 1, 128>}, {pipeline_mode = #tpu.pipeline_mode<synchronous>, transform_indices = @transform_4, window_bounds = array<i64: 4, 32>}, {pipeline_mode = #tpu.pipeline_mode<synchronous>, transform_indices = @transform_5, window_bounds = array<i64: 32, 32>}, {pipeline_mode = #tpu.pipeline_mode<synchronous>, transform_indices = @transform_6, window_bounds = array<i64: 1, 32>}, {pipeline_mode = #tpu.pipeline_mode<synchronous>, transform_indices = @transform_7, window_bounds = array<i64: 1, 32>}, {pipeline_mode = #tpu.pipeline_mode<synchronous>, transform_indices = @transform_8, window_bounds = array<i64: 1, 32>}, {transform_indices = @transform_9, window_bounds = array<i64: 8, 32>}]} {
    %c0 = arith.constant 0 : index
    %c0_0 = arith.constant 0 : index
    %c0_1 = arith.constant 0 : index
    %0 = vector.load %arg1[%c0, %c0_0, %c0_1] : memref<8x8x32xf32, #tpu.memory_space<vmem>>, vector<8x8x32xf32>
    %1 = vector.shape_cast %0 : vector<8x8x32xf32> to vector<64x32xf32>
    %c0_2 = arith.constant 0 : index
    %c0_3 = arith.constant 0 : index
    %2 = vector.load %arg3[%c0_2, %c0_3] : memref<32x128xf32, #tpu.memory_space<vmem>>, vector<32x128xf32>
    %cst = arith.constant dense<0.000000e+00> : vector<64x128xf32>
    %3 = tpu.matmul %1, %2, %cst {dimension_numbers = #tpu.dot_dimension_numbers<[1], [0], [0], [1], [0, 0, 1, 1], [], []>} : vector<64x32xf32>, vector<32x128xf32>, vector<64x128xf32> -> vector<64x128xf32>
    %c0_4 = arith.constant 0 : index
    %c0_5 = arith.constant 0 : index
    %4 = vector.load %arg4[%c0_4, %c0_5] : memref<1x128xf32, #tpu.memory_space<vmem>>, vector<1x128xf32>
    %5 = vector.broadcast %4 : vector<1x128xf32> to vector<64x128xf32>
    %6 = arith.addf %3, %5 : vector<64x128xf32>
    %7 = vector.extract_strided_slice %6 {offsets = [0, 0], sizes = [64, 32], strides = [1, 1]} : vector<64x128xf32> to vector<64x32xf32>
    %8 = vector.extract_strided_slice %6 {offsets = [0, 32], sizes = [64, 4], strides = [1, 1]} : vector<64x128xf32> to vector<64x4xf32>
    %9 = vector.shape_cast %8 : vector<64x4xf32> to vector<8x8x4xf32>
    %c0_6 = arith.constant 0 : index
    %c0_7 = arith.constant 0 : index
    %c0_8 = arith.constant 0 : index
    %10 = vector.load %arg2[%c0_6, %c0_7, %c0_8] : memref<8x8x1xf32, #tpu.memory_space<vmem>>, vector<8x8x1xf32>
    %11 = vector.broadcast %10 : vector<8x8x1xf32> to vector<8x8x4xf32>
    %12 = arith.addf %9, %11 : vector<8x8x4xf32>
    %cst_9 = arith.constant dense<0xFF800000> : vector<8x4xf32>
    %13 = vector.multi_reduction <maximumf>, %12, %cst_9 [1] : vector<8x8x4xf32> to vector<8x4xf32>
    %14 = vector.shape_cast %13 : vector<8x4xf32> to vector<8x1x4xf32>
    %15 = vector.broadcast %14 : vector<8x1x4xf32> to vector<8x8x4xf32>
    %16 = arith.subf %12, %15 : vector<8x8x4xf32>
    %17 = math.exp %16 : vector<8x8x4xf32>
    %cst_10 = arith.constant dense<0.000000e+00> : vector<8x4xf32>
    %18 = vector.multi_reduction <add>, %17, %cst_10 [1] : vector<8x8x4xf32> to vector<8x4xf32>
    %19 = vector.shape_cast %17 : vector<8x8x4xf32> to vector<64x4xf32>
    %c0_11 = arith.constant 0 : index
    %c0_12 = arith.constant 0 : index
    %20 = vector.load %arg5[%c0_11, %c0_12] : memref<4x32xf32, #tpu.memory_space<vmem>>, vector<4x32xf32>
    %cst_13 = arith.constant dense<0.000000e+00> : vector<64x32xf32>
    %21 = tpu.matmul %19, %20, %cst_13 {dimension_numbers = #tpu.dot_dimension_numbers<[1], [0], [0], [1], [0, 0, 1, 1], [], []>} : vector<64x4xf32>, vector<4x32xf32>, vector<64x32xf32> -> vector<64x32xf32>
    %22 = vector.shape_cast %21 : vector<64x32xf32> to vector<8x8x32xf32>
    %23 = vector.shape_cast %7 : vector<64x32xf32> to vector<8x8x32xf32>
    %24 = arith.mulf %22, %23 : vector<8x8x32xf32>
    %cst_14 = arith.constant dense<0.000000e+00> : vector<8x32xf32>
    %25 = vector.multi_reduction <add>, %24, %cst_14 [1] : vector<8x8x32xf32> to vector<8x32xf32>
    %c0_15 = arith.constant 0 : index
    %c0_16 = arith.constant 0 : index
    %26 = vector.load %arg5[%c0_15, %c0_16] : memref<4x32xf32, #tpu.memory_space<vmem>>, vector<4x32xf32>
    %cst_17 = arith.constant dense<0.000000e+00> : vector<8x32xf32>
    %27 = tpu.matmul %18, %26, %cst_17 {dimension_numbers = #tpu.dot_dimension_numbers<[1], [0], [0], [1], [0, 0, 1, 1], [], []>} : vector<8x4xf32>, vector<4x32xf32>, vector<8x32xf32> -> vector<8x32xf32>
    %28 = tpu.reciprocal %27 : vector<8x32xf32> -> vector<8x32xf32>
    %29 = arith.mulf %25, %28 : vector<8x32xf32>
    %c0_18 = arith.constant 0 : index
    %c0_19 = arith.constant 0 : index
    %30 = vector.load %arg6[%c0_18, %c0_19] : memref<32x32xf32, #tpu.memory_space<vmem>>, vector<32x32xf32>
    %cst_20 = arith.constant dense<0.000000e+00> : vector<8x32xf32>
    %31 = tpu.matmul %29, %30, %cst_20 {dimension_numbers = #tpu.dot_dimension_numbers<[1], [0], [0], [1], [0, 0, 1, 1], [], []>} : vector<8x32xf32>, vector<32x32xf32>, vector<8x32xf32> -> vector<8x32xf32>
    %c0_21 = arith.constant 0 : index
    %c0_22 = arith.constant 0 : index
    %32 = vector.load %arg7[%c0_21, %c0_22] : memref<1x32xf32, #tpu.memory_space<vmem>>, vector<1x32xf32>
    %33 = vector.broadcast %32 : vector<1x32xf32> to vector<8x32xf32>
    %34 = arith.addf %31, %33 : vector<8x32xf32>
    %cst_23 = arith.constant dense<0.000000e+00> : vector<8xf32>
    %35 = vector.multi_reduction <add>, %34, %cst_23 [1] : vector<8x32xf32> to vector<8xf32>
    %36 = vector.shape_cast %35 : vector<8xf32> to vector<8x1xf32>
    %cst_24 = arith.constant 3.200000e+01 : f32
    %37 = vector.broadcast %cst_24 : f32 to vector<8x1xf32>
    %38 = arith.divf %36, %37 : vector<8x1xf32>
    %39 = vector.broadcast %38 : vector<8x1xf32> to vector<8x32xf32>
    %40 = arith.subf %34, %39 : vector<8x32xf32>
    %41 = arith.mulf %40, %40 : vector<8x32xf32>
    %cst_25 = arith.constant dense<0.000000e+00> : vector<8xf32>
    %42 = vector.multi_reduction <add>, %41, %cst_25 [1] : vector<8x32xf32> to vector<8xf32>
    %43 = vector.shape_cast %42 : vector<8xf32> to vector<8x1xf32>
    %cst_26 = arith.constant 3.200000e+01 : f32
    %44 = vector.broadcast %cst_26 : f32 to vector<8x1xf32>
    %45 = arith.divf %43, %44 : vector<8x1xf32>
    %46 = vector.broadcast %38 : vector<8x1xf32> to vector<8x32xf32>
    %47 = arith.subf %34, %46 : vector<8x32xf32>
    %cst_27 = arith.constant 9.99999974E-6 : f32
    %48 = vector.broadcast %cst_27 : f32 to vector<8x1xf32>
    %49 = arith.addf %45, %48 : vector<8x1xf32>
    %50 = math.rsqrt %49 : vector<8x1xf32>
    %51 = vector.broadcast %50 : vector<8x1xf32> to vector<8x32xf32>
    %52 = arith.mulf %47, %51 : vector<8x32xf32>
    %c0_28 = arith.constant 0 : index
    %c0_29 = arith.constant 0 : index
    %53 = vector.load %arg8[%c0_28, %c0_29] : memref<1x32xf32, #tpu.memory_space<vmem>>, vector<1x32xf32>
    %54 = vector.broadcast %53 : vector<1x32xf32> to vector<8x32xf32>
    %55 = arith.mulf %52, %54 : vector<8x32xf32>
    %c0_30 = arith.constant 0 : index
    %c0_31 = arith.constant 0 : index
    %56 = vector.load %arg9[%c0_30, %c0_31] : memref<1x32xf32, #tpu.memory_space<vmem>>, vector<1x32xf32>
    %57 = vector.broadcast %56 : vector<1x32xf32> to vector<8x32xf32>
    %58 = arith.addf %55, %57 : vector<8x32xf32>
    %c0_32 = arith.constant 0 : index
    %c0_33 = arith.constant 0 : index
    %59 = vector.load %arg10[%c0_32, %c0_33] : memref<8x32xf32, #tpu.memory_space<vmem>>, vector<8x32xf32>
    tpu.vector_store %arg10[%c0_32, %c0_33], %58 {strides = array<i32>} : memref<8x32xf32, #tpu.memory_space<vmem>>, vector<8x32xf32>,
    return
  }
  func.func @transform_0(%arg0: i32) -> (i32, i32, i32) {
    %c0_i32 = arith.constant 0 : i32
    %c0_i32_0 = arith.constant 0 : i32
    %c0_i32_1 = arith.constant 0 : i32
    return %arg0, %c0_i32, %c0_i32_0 : i32, i32, i32
  }
  func.func @transform_1(%arg0: i32) -> (i32, i32, i32) {
    %c0_i32 = arith.constant 0 : i32
    %c0_i32_0 = arith.constant 0 : i32
    %c0_i32_1 = arith.constant 0 : i32
    return %arg0, %c0_i32, %c0_i32_0 : i32, i32, i32
  }
  func.func @transform_2(%arg0: i32) -> (i32, i32) {
    %c0_i32 = arith.constant 0 : i32
    %c0_i32_0 = arith.constant 0 : i32
    %c0_i32_1 = arith.constant 0 : i32
    return %c0_i32, %c0_i32_0 : i32, i32
  }
  func.func @transform_3(%arg0: i32) -> (i32, i32) {
    %c0_i32 = arith.constant 0 : i32
    %c0_i32_0 = arith.constant 0 : i32
    %c0_i32_1 = arith.constant 0 : i32
    return %c0_i32, %c0_i32_0 : i32, i32
  }
  func.func @transform_4(%arg0: i32) -> (i32, i32) {
    %c0_i32 = arith.constant 0 : i32
    %c0_i32_0 = arith.constant 0 : i32
    %c0_i32_1 = arith.constant 0 : i32
    return %c0_i32, %c0_i32_0 : i32, i32
  }
  func.func @transform_5(%arg0: i32) -> (i32, i32) {
    %c0_i32 = arith.constant 0 : i32
    %c0_i32_0 = arith.constant 0 : i32
    %c0_i32_1 = arith.constant 0 : i32
    return %c0_i32, %c0_i32_0 : i32, i32
  }
  func.func @transform_6(%arg0: i32) -> (i32, i32) {
    %c0_i32 = arith.constant 0 : i32
    %c0_i32_0 = arith.constant 0 : i32
    %c0_i32_1 = arith.constant 0 : i32
    return %c0_i32, %c0_i32_0 : i32, i32
  }
  func.func @transform_7(%arg0: i32) -> (i32, i32) {
    %c0_i32 = arith.constant 0 : i32
    %c0_i32_0 = arith.constant 0 : i32
    %c0_i32_1 = arith.constant 0 : i32
    return %c0_i32, %c0_i32_0 : i32, i32
  }
  func.func @transform_8(%arg0: i32) -> (i32, i32) {
    %c0_i32 = arith.constant 0 : i32
    %c0_i32_0 = arith.constant 0 : i32
    %c0_i32_1 = arith.constant 0 : i32
    return %c0_i32, %c0_i32_0 : i32, i32
  }
  func.func @transform_9(%arg0: i32) -> (i32, i32) {
    %c0_i32 = arith.constant 0 : i32
    %c0_i32_0 = arith.constant 0 : i32
    return %arg0, %c0_i32 : i32, i32
  }
}

</mosaic_0001>

<llo_original>
// kernel: tpu_custom_call.1
$region0: #{tpu_custom_call.1}
  #allocation0 [shape = 'u32[]', space=smem, size = 0x4, offset = 0x4, fixed_abs, tag = 'smem constant byte address 0x4 - core index']
  #allocation1 [shape = 'u32[144,128]{1,0:T(1,128)}', space=vmem, size = 0x12000, scoped, tag = 'internal scratch']
  %s0 = inlined_call_operand.vmem [shape: f32[8,8,32], index: 0, kind: input, shape index: {}]
  %s1 = inlined_call_operand.vmem [shape: f32[8,8,1], index: 1, kind: input, shape index: {}]
  %s2 = inlined_call_operand.hbm [shape: f32[32,128], index: 2, kind: input, shape index: {}]
  %s3 = inlined_call_operand.vmem [shape: f32[1,128], index: 3, kind: input, shape index: {}]
  %s4 = inlined_call_operand.vmem [shape: f32[4,32], index: 4, kind: input, shape index: {}]
  %s5 = inlined_call_operand.hbm [shape: f32[32,32], index: 5, kind: input, shape index: {}]
  %s6 = inlined_call_operand.vmem [shape: f32[1,32], index: 6, kind: input, shape index: {}]
  %s7 = inlined_call_operand.vmem [shape: f32[1,32], index: 7, kind: input, shape index: {}]
  %s8 = inlined_call_operand.vmem [shape: f32[1,32], index: 8, kind: input, shape index: {}]
  %s9 = inlined_call_operand.hbm [shape: f32[8,32], index: 9, kind: output, shape index: {}]
  %s10 = sld [smem:[#allocation0]]
  $region54: #{tpu_custom_call.1} parent=0
    _
  %s12 = ssub.s32 1, %s10
  %s13 = scalar_select 0, %s12, %s10
  $region1: #{tpu_custom_call.1} parent=0
    #allocation2 [shape = 'u8[16384]{0}', space=vmem, size = 0x4000, scoped, tag = 'input window, operand 2, single buffered']
    #allocation3 [shape = 's32[1]{0}', space=sflag, size = 0x4, scoped, tag = 'scoped memory for tpu_custom_call.1']
    #allocation4 [shape = 's32[1]{0}', space=sflag, size = 0x4, scoped, tag = 'scoped memory for tpu_custom_call.1']
    #allocation5 [shape = 'u8[16384]{0}', space=vmem, size = 0x4000, scoped, tag = 'input window, operand 5, single buffered']
    #allocation6 [shape = 's32[1]{0}', space=sflag, size = 0x4, scoped, tag = 'scoped memory for tpu_custom_call.1']
    #allocation7 [shape = 'u8[4096]{0}', space=vmem, size = 0x1000, scoped, tag = 'output window, operand 0, single buffered']
    %14 = vsyncpa [#allocation3], 0
    %15 = vsyncpa [#allocation6], 0
    %16 = vsyncpa [#allocation4], 0
    // Predicated region
    $region2: #{tpu_custom_call.1} parent=1 // pred_check
      _
    $region3: #{tpu_custom_call.1} parent=1 // pred_check_branch
      %18 = sbr.rel (0) target = $region5
    $region4: #{tpu_custom_call.1} parent=1 // pred_region
      _
    $region5: #{tpu_custom_call.1} parent=1 // pred_fallthru
      _
    // Predicated region
    $region6: #{tpu_custom_call.1} parent=1 // pred_check
      _
    $region7: #{tpu_custom_call.1} parent=1 // pred_check_branch
      %20 = sbr.rel (0) target = $region9
    $region8: #{tpu_custom_call.1} parent=1 // pred_region
      _
    $region9: #{tpu_custom_call.1} parent=1 // pred_fallthru
      _
    // Predicated region
    $region10: #{tpu_custom_call.1} parent=1 // pred_check
      _
    $region11: #{tpu_custom_call.1} parent=1 // pred_check_branch
      %22 = sbr.rel (0) target = $region13
    $region12: #{tpu_custom_call.1} parent=1 // pred_region
      %s24 = ssub.s32 512, 512
      %25 = vsyncadd [#allocation3], %s24
      %s26 = sshll.u32 [#allocation2], 4
      %s27 = int_to_ptr.vmem [resolvable:$true] %s26
      %32 = dma.hbm_to_vmem [thread:$0]  %s2, 512, %s27, [#allocation3], 128, 128, 8
    $region13: #{tpu_custom_call.1} parent=1 // pred_fallthru
      _
    // Predicated region
    $region14: #{tpu_custom_call.1} parent=1 // pred_check
      _
    $region15: #{tpu_custom_call.1} parent=1 // pred_check_branch
      %34 = sbr.rel (0) target = $region17
    $region16: #{tpu_custom_call.1} parent=1 // pred_region
      _
    $region17: #{tpu_custom_call.1} parent=1 // pred_fallthru
      _
    // Predicated region
    $region18: #{tpu_custom_call.1} parent=1 // pred_check
      _
    $region19: #{tpu_custom_call.1} parent=1 // pred_check_branch
      %36 = sbr.rel (0) target = $region21
    $region20: #{tpu_custom_call.1} parent=1 // pred_region
      _
    $region21: #{tpu_custom_call.1} parent=1 // pred_fallthru
      _
    // Predicated region
    $region22: #{tpu_custom_call.1} parent=1 // pred_check
      _
    $region23: #{tpu_custom_call.1} parent=1 // pred_check_branch
      %38 = sbr.rel (0) target = $region25
    $region24: #{tpu_custom_call.1} parent=1 // pred_region
      %s40 = ssub.s32 512, 512
      %41 = vsyncadd [#allocation6], %s40
      %s42 = sshll.u32 [#allocation5], 4
      %s43 = int_to_ptr.vmem [resolvable:$true] %s42
      %48 = dma.hbm_to_vmem [thread:$0]  %s5, 512, %s43, [#allocation6], 128, 128, 8
    $region25: #{tpu_custom_call.1} parent=1 // pred_fallthru
      _
    // Predicated region
    $region26: #{tpu_custom_call.1} parent=1 // pred_check
      _
    $region27: #{tpu_custom_call.1} parent=1 // pred_check_branch
      %50 = sbr.rel (0) target = $region29
    $region28: #{tpu_custom_call.1} parent=1 // pred_region
      _
    $region29: #{tpu_custom_call.1} parent=1 // pred_fallthru
      _
    // Predicated region
    $region30: #{tpu_custom_call.1} parent=1 // pred_check
      _
    $region31: #{tpu_custom_call.1} parent=1 // pred_check_branch
      %52 = sbr.rel (0) target = $region33
    $region32: #{tpu_custom_call.1} parent=1 // pred_region
      _
    $region33: #{tpu_custom_call.1} parent=1 // pred_fallthru
      _
    // Predicated region
    $region34: #{tpu_custom_call.1} parent=1 // pred_check
      _
    $region35: #{tpu_custom_call.1} parent=1 // pred_check_branch
      %54 = sbr.rel (0) target = $region37
    $region36: #{tpu_custom_call.1} parent=1 // pred_region
      _
    $region37: #{tpu_custom_call.1} parent=1 // pred_fallthru
      _
    // Predicated region
    $region38: #{tpu_custom_call.1} parent=1 // pred_check
      _
    $region39: #{tpu_custom_call.1} parent=1 // pred_check_branch
      %56 = sbr.rel (0) target = $region41
    $region40: #{tpu_custom_call.1} parent=1 // pred_region
      %57 = dma.done [#allocation3], 512
    $region41: #{tpu_custom_call.1} parent=1 // pred_fallthru
      _
    // Predicated region
    $region42: #{tpu_custom_call.1} parent=1 // pred_check
      _
    $region43: #{tpu_custom_call.1} parent=1 // pred_check_branch
      %59 = sbr.rel (0) target = $region45
    $region44: #{tpu_custom_call.1} parent=1 // pred_region
      %60 = dma.done [#allocation6], 512
    $region45: #{tpu_custom_call.1} parent=1 // pred_fallthru
      _
    %v61 = vld [vmem:[%s0] sm:$0xff]
    %v62 = vld [vmem:[%s0 + $0x8] sm:$0xff]
    %v63 = vld [vmem:[%s0 + $0x10] sm:$0xff]
    %v64 = vld [vmem:[%s0 + $0x18] sm:$0xff]
    %v65 = vld [vmem:[%s0 + $0x20] sm:$0xff]
    %v66 = vld [vmem:[%s0 + $0x28] sm:$0xff]
    %v67 = vld [vmem:[%s0 + $0x30] sm:$0xff]
    %v68 = vld [vmem:[%s0 + $0x38] sm:$0xff]
    %v69 = vld [vmem:[#allocation2] sm:$0xff]
    %v70 = vld [vmem:[#allocation2 + $0x8] sm:$0xff]
    %v71 = vld [vmem:[#allocation2 + $0x10] sm:$0xff]
    %v72 = vld [vmem:[#allocation2 + $0x18] sm:$0xff]
    %v73 = vld [vmem:[%s3] sm:$0x1]
    %v75 = vlaneseq
    %v76 = vshrl.u32 %v75, 7
    %v77 = vsub.s32 0, %v76
    %v78 = vrot.slane %v73, %v77
    %vm80 = vcmask 261120
    %v82 = vsel %vm80, %v61, 0
    %v85 = vsel %vm80, %v62, 0
    %v88 = vsel %vm80, %v63, 0
    %v91 = vsel %vm80, %v64, 0
    %v94 = vsel %vm80, %v65, 0
    %v97 = vsel %vm80, %v66, 0
    %v100 = vsel %vm80, %v67, 0
    %v103 = vsel %vm80, %v68, 0
    %105 = vmatprep.subr.mxu0 0.0
    %106 = vmatpush1.msra.mxu0 %v69
    %107 = vmatprep.subr.mxu0 0.0
    %108 = vmatpush1.msra.mxu0 %v70
    %109 = vmatprep.subr.mxu0 0.0
    %110 = vmatpush1.msra.mxu0 %v71
    %111 = vmatprep.subr.mxu0 0.0
    %112 = vmatpush1.msra.mxu0 %v72
    %113 = vmatprep.subr.mxu0 0.0
    %114 = vmatpush1.msra.mxu0 0.0
    %115 = vmatprep.subr.mxu0 0.0
    %116 = vmatpush1.msra.mxu0 0.0
    %117 = vmatprep.subr.mxu0 0.0
    %118 = vmatpush1.msra.mxu0 0.0
    %119 = vmatprep.subr.mxu0 0.0
    %120 = vmatpush1.msra.mxu0 0.0
    %121 = vmatprep.subr.mxu0 0.0
    %122 = vmatpush1.msra.mxu0 0.0
    %123 = vmatprep.subr.mxu0 0.0
    %124 = vmatpush1.msra.mxu0 0.0
    %125 = vmatprep.subr.mxu0 0.0
    %126 = vmatpush1.msra.mxu0 0.0
    %127 = vmatprep.subr.mxu0 0.0
    %128 = vmatpush1.msra.mxu0 0.0
    %129 = vmatprep.subr.mxu0 0.0
    %130 = vmatpush1.msra.mxu0 0.0
    %131 = vmatprep.subr.mxu0 0.0
    %132 = vmatpush1.msra.mxu0 0.0
    %133 = vmatprep.subr.mxu0 0.0
    %134 = vmatpush1.msra.mxu0 0.0
    %135 = vmatprep.subr.mxu0 0.0
    %136 = vmatpush1.msra.mxu0 0.0
    %137 = vmatprep.subr.mxu0 0.0
    %138 = vmatpush1.msra.mxu0 0.0
    %139 = vmatprep.subr.mxu0 0.0
    %140 = vmatpush1.msra.mxu0 0.0
    %141 = vmatprep.subr.mxu0 0.0
    %142 = vmatpush1.msra.mxu0 0.0
    %143 = vmatprep.subr.mxu0 0.0
    %144 = vmatpush1.msra.mxu0 0.0
    %145 = vmatprep.subr.mxu0 0.0
    %146 = vmatpush1.msra.mxu0 0.0
    %147 = vmatprep.subr.mxu0 0.0
    %148 = vmatpush1.msra.mxu0 0.0
    %149 = vmatprep.subr.mxu0 0.0
    %150 = vmatpush1.msra.mxu0 0.0
    %151 = vmatprep.subr.mxu0 0.0
    %152 = vmatpush1.msra.mxu0 0.0
    %153 = vmatprep.subr.mxu0 0.0
    %154 = vmatpush1.msra.mxu0 0.0
    %155 = vmatprep.subr.mxu0 0.0
    %156 = vmatpush1.msra.mxu0 0.0
    %157 = vmatprep.subr.mxu0 0.0
    %158 = vmatpush1.msra.mxu0 0.0
    %159 = vmatprep.subr.mxu0 0.0
    %160 = vmatpush1.msra.mxu0 0.0
    %161 = vmatprep.subr.mxu0 0.0
    %162 = vmatpush1.msra.mxu0 0.0
    %163 = vmatprep.subr.mxu0 0.0
    %164 = vmatpush1.msra.mxu0 0.0
    %165 = vmatprep.subr.mxu0 0.0
    %166 = vmatpush1.msra.mxu0 0.0
    %167 = vmatprep.subr.mxu0 0.0
    %168 = vmatpush1.msra.mxu0 0.0
    %169 = vmatprep.mubr.f32.mxu0 0.0
    %170 = vmatmul.mubr.f32.gmra.mrb[0].mxu0 %v82
    %v171 = vpop.f32.mrb[0].mxu0
    %v172 = vadd.f32 %v78, %v171
    %v173 = vpop.f32.mrb[0].mxu0
    %174 = vmatprep.mubr.f32.mxu0 0.0
    %175 = vmatmul.mubr.f32.gmra.mrb[0].mxu0 %v85
    %v176 = vpop.f32.mrb[0].mxu0
    %v177 = vadd.f32 %v78, %v176
    %v178 = vpop.f32.mrb[0].mxu0
    %179 = vmatprep.mubr.f32.mxu0 0.0
    %180 = vmatmul.mubr.f32.gmra.mrb[0].mxu0 %v88
    %v181 = vpop.f32.mrb[0].mxu0
    %v182 = vadd.f32 %v78, %v181
    %v183 = vpop.f32.mrb[0].mxu0
    %184 = vmatprep.mubr.f32.mxu0 0.0
    %185 = vmatmul.mubr.f32.gmra.mrb[0].mxu0 %v91
    %v186 = vpop.f32.mrb[0].mxu0
    %v187 = vadd.f32 %v78, %v186
    %v188 = vpop.f32.mrb[0].mxu0
    %189 = vmatprep.mubr.f32.mxu0 0.0
    %190 = vmatmul.mubr.f32.gmra.mrb[0].mxu0 %v94
    %v191 = vpop.f32.mrb[0].mxu0
    %v192 = vadd.f32 %v78, %v191
    %v193 = vpop.f32.mrb[0].mxu0
    %194 = vmatprep.mubr.f32.mxu0 0.0
    %195 = vmatmul.mubr.f32.gmra.mrb[0].mxu0 %v97
    %v196 = vpop.f32.mrb[0].mxu0
    %v197 = vadd.f32 %v78, %v196
    %v198 = vpop.f32.mrb[0].mxu0
    %199 = vmatprep.mubr.f32.mxu0 0.0
    %200 = vmatmul.mubr.f32.gmra.mrb[0].mxu0 %v100
    %v201 = vpop.f32.mrb[0].mxu0
    %v202 = vadd.f32 %v78, %v201
    %v203 = vpop.f32.mrb[0].mxu0
    %204 = vmatprep.mubr.f32.mxu0 0.0
    %205 = vmatmul.mubr.f32.gmra.mrb[0].mxu0 %v103
    %v206 = vpop.f32.mrb[0].mxu0
    %v207 = vadd.f32 %v78, %v206
    %v208 = vpop.f32.mrb[0].mxu0
    %209 = vdwg.mxu0
    %v210 = vld [vmem:[%s1] sm:$0xff]
    %v211 = vld [vmem:[%s1 + $0x8] sm:$0xff]
    %v212 = vld [vmem:[%s1 + $0x10] sm:$0xff]
    %v213 = vld [vmem:[%s1 + $0x18] sm:$0xff]
    %v214 = vld [vmem:[%s1 + $0x20] sm:$0xff]
    %v215 = vld [vmem:[%s1 + $0x28] sm:$0xff]
    %v216 = vld [vmem:[%s1 + $0x30] sm:$0xff]
    %v217 = vld [vmem:[%s1 + $0x38] sm:$0xff]
    %219 = vset.pattern.permute.xlu0 0
    %220 = vperm.xlu0 %219, %v210
    %v221 = vpop.permute.xlu0 %220
    %224 = vset.pattern.permute.xlu0 0
    %225 = vperm.xlu0 %224, %v211
    %v226 = vpop.permute.xlu0 %225
    %229 = vset.pattern.permute.xlu0 0
    %230 = vperm.xlu0 %229, %v212
    %v231 = vpop.permute.xlu0 %230
    %234 = vset.pattern.permute.xlu0 0
    %235 = vperm.xlu0 %234, %v213
    %v236 = vpop.permute.xlu0 %235
    %239 = vset.pattern.permute.xlu0 0
    %240 = vperm.xlu0 %239, %v214
    %v241 = vpop.permute.xlu0 %240
    %244 = vset.pattern.permute.xlu0 0
    %245 = vperm.xlu0 %244, %v215
    %v246 = vpop.permute.xlu0 %245
    %249 = vset.pattern.permute.xlu0 0
    %250 = vperm.xlu0 %249, %v216
    %v251 = vpop.permute.xlu0 %250
    %254 = vset.pattern.permute.xlu0 0
    %255 = vperm.xlu0 %254, %v217
    %v256 = vpop.permute.xlu0 %255
    %v258 = vadd.f32 %v172, %v221
    %v259 = vadd.f32 %v177, %v226
    %v260 = vadd.f32 %v182, %v231
    %v261 = vadd.f32 %v187, %v236
    %v262 = vadd.f32 %v192, %v241
    %v263 = vadd.f32 %v197, %v246
    %v264 = vadd.f32 %v202, %v251
    %v265 = vadd.f32 %v207, %v256
    %vm266 = vcmask 294144
    %v267 = vsel %vm266, %v258, -inf
    %v268 = vrot.slane %v267, 4
    %v269 = vmax.f32 %v267, %v268
    %v270 = vrot.slane %v269, 2
    %v271 = vmax.f32 %v269, %v270
    %v272 = vrot.slane %v271, 1
    %v273 = vmax.f32 %v271, %v272
    %v274 = vsel %vm266, %v259, -inf
    %v275 = vrot.slane %v274, 4
    %v276 = vmax.f32 %v274, %v275
    %v277 = vrot.slane %v276, 2
    %v278 = vmax.f32 %v276, %v277
    %v279 = vrot.slane %v278, 1
    %v280 = vmax.f32 %v278, %v279
    %v281 = vsel %vm266, %v260, -inf
    %v282 = vrot.slane %v281, 4
    %v283 = vmax.f32 %v281, %v282
    %v284 = vrot.slane %v283, 2
    %v285 = vmax.f32 %v283, %v284
    %v286 = vrot.slane %v285, 1
    %v287 = vmax.f32 %v285, %v286
    %v288 = vsel %vm266, %v261, -inf
    %v289 = vrot.slane %v288, 4
    %v290 = vmax.f32 %v288, %v289
    %v291 = vrot.slane %v290, 2
    %v292 = vmax.f32 %v290, %v291
    %v293 = vrot.slane %v292, 1
    %v294 = vmax.f32 %v292, %v293
    %v295 = vsel %vm266, %v262, -inf
    %v296 = vrot.slane %v295, 4
    %v297 = vmax.f32 %v295, %v296
    %v298 = vrot.slane %v297, 2
    %v299 = vmax.f32 %v297, %v298
    %v300 = vrot.slane %v299, 1
    %v301 = vmax.f32 %v299, %v300
    %v302 = vsel %vm266, %v263, -inf
    %v303 = vrot.slane %v302, 4
    %v304 = vmax.f32 %v302, %v303
    %v305 = vrot.slane %v304, 2
    %v306 = vmax.f32 %v304, %v305
    %v307 = vrot.slane %v306, 1
    %v308 = vmax.f32 %v306, %v307
    %v309 = vsel %vm266, %v264, -inf
    %v310 = vrot.slane %v309, 4
    %v311 = vmax.f32 %v309, %v310
    %v312 = vrot.slane %v311, 2
    %v313 = vmax.f32 %v311, %v312
    %v314 = vrot.slane %v313, 1
    %v315 = vmax.f32 %v313, %v314
    %v316 = vsel %vm266, %v265, -inf
    %v317 = vrot.slane %v316, 4
    %v318 = vmax.f32 %v316, %v317
    %v319 = vrot.slane %v318, 2
    %v320 = vmax.f32 %v318, %v319
    %v321 = vrot.slane %v320, 1
    %v322 = vmax.f32 %v320, %v321
    %v323 = vsub.f32 %v258, %v273
    %v324 = vsub.f32 %v259, %v280
    %v325 = vsub.f32 %v260, %v287
    %v326 = vsub.f32 %v261, %v294
    %v327 = vsub.f32 %v262, %v301
    %v328 = vsub.f32 %v263, %v308
    %v329 = vsub.f32 %v264, %v315
    %v330 = vsub.f32 %v265, %v322
    %v331 = vmul.f32 %v323, 1.442695
    %v332 = vpow.pop %v331
    %v333 = vmul.f32 %v324, 1.442695
    %v334 = vpow.pop %v333
    %v335 = vmul.f32 %v325, 1.442695
    %v336 = vpow.pop %v335
    %v337 = vmul.f32 %v326, 1.442695
    %v338 = vpow.pop %v337
    %v339 = vmul.f32 %v327, 1.442695
    %v340 = vpow.pop %v339
    %v341 = vmul.f32 %v328, 1.442695
    %v342 = vpow.pop %v341
    %v343 = vmul.f32 %v329, 1.442695
    %v344 = vpow.pop %v343
    %v345 = vmul.f32 %v330, 1.442695
    %v346 = vpow.pop %v345
    %v347 = vsel %vm266, %v332, 0.0
    %v348 = vrot.slane %v347, 4
    %v349 = vadd.f32 %v347, %v348
    %v350 = vrot.slane %v349, 2
    %v351 = vadd.f32 %v349, %v350
    %v352 = vrot.slane %v351, 1
    %v353 = vadd.f32 %v351, %v352
    %v354 = vsel %vm266, %v334, 0.0
    %v355 = vrot.slane %v354, 4
    %v356 = vadd.f32 %v354, %v355
    %v357 = vrot.slane %v356, 2
    %v358 = vadd.f32 %v356, %v357
    %v359 = vrot.slane %v358, 1
    %v360 = vadd.f32 %v358, %v359
    %v361 = vsel %vm266, %v336, 0.0
    %v362 = vrot.slane %v361, 4
    %v363 = vadd.f32 %v361, %v362
    %v364 = vrot.slane %v363, 2
    %v365 = vadd.f32 %v363, %v364
    %v366 = vrot.slane %v365, 1
    %v367 = vadd.f32 %v365, %v366
    %v368 = vsel %vm266, %v338, 0.0
    %v369 = vrot.slane %v368, 4
    %v370 = vadd.f32 %v368, %v369
    %v371 = vrot.slane %v370, 2
    %v372 = vadd.f32 %v370, %v371
    %v373 = vrot.slane %v372, 1
    %v374 = vadd.f32 %v372, %v373
    %v375 = vsel %vm266, %v340, 0.0
    %v376 = vrot.slane %v375, 4
    %v377 = vadd.f32 %v375, %v376
    %v378 = vrot.slane %v377, 2
    %v379 = vadd.f32 %v377, %v378
    %v380 = vrot.slane %v379, 1
    %v381 = vadd.f32 %v379, %v380
    %v382 = vsel %vm266, %v342, 0.0
    %v383 = vrot.slane %v382, 4
    %v384 = vadd.f32 %v382, %v383
    %v385 = vrot.slane %v384, 2
    %v386 = vadd.f32 %v384, %v385
    %v387 = vrot.slane %v386, 1
    %v388 = vadd.f32 %v386, %v387
    %v389 = vsel %vm266, %v344, 0.0
    %v390 = vrot.slane %v389, 4
    %v391 = vadd.f32 %v389, %v390
    %v392 = vrot.slane %v391, 2
    %v393 = vadd.f32 %v391, %v392
    %v394 = vrot.slane %v393, 1
    %v395 = vadd.f32 %v393, %v394
    %v396 = vsel %vm266, %v346, 0.0
    %v397 = vrot.slane %v396, 4
    %v398 = vadd.f32 %v396, %v397
    %v399 = vrot.slane %v398, 2
    %v400 = vadd.f32 %v398, %v399
    %v401 = vrot.slane %v400, 1
    %v402 = vadd.f32 %v400, %v401
    %v403 = vld [vmem:[%s4] sm:$0xf]
    %412 = vrot.lane.b32.xlu0 %v332, 96
    %v413 = vpop.permute.xlu0 %412
    %414 = vrot.lane.b32.xlu0 %v334, 96
    %v415 = vpop.permute.xlu0 %414
    %416 = vrot.lane.b32.xlu0 %v336, 96
    %v417 = vpop.permute.xlu0 %416
    %418 = vrot.lane.b32.xlu0 %v338, 96
    %v419 = vpop.permute.xlu0 %418
    %420 = vrot.lane.b32.xlu0 %v340, 96
    %v421 = vpop.permute.xlu0 %420
    %422 = vrot.lane.b32.xlu0 %v342, 96
    %v423 = vpop.permute.xlu0 %422
    %424 = vrot.lane.b32.xlu0 %v344, 96
    %v425 = vpop.permute.xlu0 %424
    %426 = vrot.lane.b32.xlu0 %v346, 96
    %v427 = vpop.permute.xlu0 %426
    %vm428 = vcmask 31744
    %v429 = vsel %vm428, %v413, 0
    %v431 = vsel %vm428, %v415, 0
    %v433 = vsel %vm428, %v417, 0
    %v435 = vsel %vm428, %v419, 0
    %v437 = vsel %vm428, %v421, 0
    %v439 = vsel %vm428, %v423, 0
    %v441 = vsel %vm428, %v425, 0
    %v443 = vsel %vm428, %v427, 0
    %vm445 = vcmask 1043456
    %v447 = vsel %vm445, %v403, 0
    %449 = vmatprep.subr.mxu0 0.0
    %450 = vmatpush1.msra.mxu0 %v447
    %451 = vmatprep.subr.mxu0 0.0
    %452 = vmatpush1.msra.mxu0 0.0
    %453 = vmatprep.subr.mxu0 0.0
    %454 = vmatpush1.msra.mxu0 0.0
    %455 = vmatprep.subr.mxu0 0.0
    %456 = vmatpush1.msra.mxu0 0.0
    %457 = vmatprep.subr.mxu0 0.0
    %458 = vmatpush1.msra.mxu0 0.0
    %459 = vmatprep.subr.mxu0 0.0
    %460 = vmatpush1.msra.mxu0 0.0
    %461 = vmatprep.subr.mxu0 0.0
    %462 = vmatpush1.msra.mxu0 0.0
    %463 = vmatprep.subr.mxu0 0.0
    %464 = vmatpush1.msra.mxu0 0.0
    %465 = vmatprep.subr.mxu0 0.0
    %466 = vmatpush1.msra.mxu0 0.0
    %467 = vmatprep.subr.mxu0 0.0
    %468 = vmatpush1.msra.mxu0 0.0
    %469 = vmatprep.subr.mxu0 0.0
    %470 = vmatpush1.msra.mxu0 0.0
    %471 = vmatprep.subr.mxu0 0.0
    %472 = vmatpush1.msra.mxu0 0.0
    %473 = vmatprep.subr.mxu0 0.0
    %474 = vmatpush1.msra.mxu0 0.0
    %475 = vmatprep.subr.mxu0 0.0
    %476 = vmatpush1.msra.mxu0 0.0
    %477 = vmatprep.subr.mxu0 0.0
    %478 = vmatpush1.msra.mxu0 0.0
    %479 = vmatprep.subr.mxu0 0.0
    %480 = vmatpush1.msra.mxu0 0.0
    %481 = vmatprep.subr.mxu0 0.0
    %482 = vmatpush1.msra.mxu0 0.0
    %483 = vmatprep.subr.mxu0 0.0
    %484 = vmatpush1.msra.mxu0 0.0
    %485 = vmatprep.subr.mxu0 0.0
    %486 = vmatpush1.msra.mxu0 0.0
    %487 = vmatprep.subr.mxu0 0.0
    %488 = vmatpush1.msra.mxu0 0.0
    %489 = vmatprep.subr.mxu0 0.0
    %490 = vmatpush1.msra.mxu0 0.0
    %491 = vmatprep.subr.mxu0 0.0
    %492 = vmatpush1.msra.mxu0 0.0
    %493 = vmatprep.subr.mxu0 0.0
    %494 = vmatpush1.msra.mxu0 0.0
    %495 = vmatprep.subr.mxu0 0.0
    %496 = vmatpush1.msra.mxu0 0.0
    %497 = vmatprep.subr.mxu0 0.0
    %498 = vmatpush1.msra.mxu0 0.0
    %499 = vmatprep.subr.mxu0 0.0
    %500 = vmatpush1.msra.mxu0 0.0
    %501 = vmatprep.subr.mxu0 0.0
    %502 = vmatpush1.msra.mxu0 0.0
    %503 = vmatprep.subr.mxu0 0.0
    %504 = vmatpush1.msra.mxu0 0.0
    %505 = vmatprep.subr.mxu0 0.0
    %506 = vmatpush1.msra.mxu0 0.0
    %507 = vmatprep.subr.mxu0 0.0
    %508 = vmatpush1.msra.mxu0 0.0
    %509 = vmatprep.subr.mxu0 0.0
    %510 = vmatpush1.msra.mxu0 0.0
    %511 = vmatprep.subr.mxu0 0.0
    %512 = vmatpush1.msra.mxu0 0.0
    %513 = vmatprep.mubr.f32.mxu0 0.0
    %514 = vmatmul.mubr.f32.gmra.mrb[0].mxu0 %v429
    %v515 = vpop.f32.mrb[0].mxu0
    %v516 = vadd.f32 0.0, %v515
    %v517 = vpop.f32.mrb[0].mxu0
    %518 = vmatprep.mubr.f32.mxu0 0.0
    %519 = vmatmul.mubr.f32.gmra.mrb[0].mxu0 %v431
    %v520 = vpop.f32.mrb[0].mxu0
    %v521 = vadd.f32 0.0, %v520
    %v522 = vpop.f32.mrb[0].mxu0
    %523 = vmatprep.mubr.f32.mxu0 0.0
    %524 = vmatmul.mubr.f32.gmra.mrb[0].mxu0 %v433
    %v525 = vpop.f32.mrb[0].mxu0
    %v526 = vadd.f32 0.0, %v525
    %v527 = vpop.f32.mrb[0].mxu0
    %528 = vmatprep.mubr.f32.mxu0 0.0
    %529 = vmatmul.mubr.f32.gmra.mrb[0].mxu0 %v435
    %v530 = vpop.f32.mrb[0].mxu0
    %v531 = vadd.f32 0.0, %v530
    %v532 = vpop.f32.mrb[0].mxu0
    %533 = vmatprep.mubr.f32.mxu0 0.0
    %534 = vmatmul.mubr.f32.gmra.mrb[0].mxu0 %v437
    %v535 = vpop.f32.mrb[0].mxu0
    %v536 = vadd.f32 0.0, %v535
    %v537 = vpop.f32.mrb[0].mxu0
    %538 = vmatprep.mubr.f32.mxu0 0.0
    %539 = vmatmul.mubr.f32.gmra.mrb[0].mxu0 %v439
    %v540 = vpop.f32.mrb[0].mxu0
    %v541 = vadd.f32 0.0, %v540
    %v542 = vpop.f32.mrb[0].mxu0
    %543 = vmatprep.mubr.f32.mxu0 0.0
    %544 = vmatmul.mubr.f32.gmra.mrb[0].mxu0 %v441
    %v545 = vpop.f32.mrb[0].mxu0
    %v546 = vadd.f32 0.0, %v545
    %v547 = vpop.f32.mrb[0].mxu0
    %548 = vmatprep.mubr.f32.mxu0 0.0
    %549 = vmatmul.mubr.f32.gmra.mrb[0].mxu0 %v443
    %v550 = vpop.f32.mrb[0].mxu0
    %v551 = vadd.f32 0.0, %v550
    %v552 = vpop.f32.mrb[0].mxu0
    %553 = vdwg.mxu0
    %v554 = vmul.f32 %v516, %v172
    %v555 = vmul.f32 %v521, %v177
    %v556 = vmul.f32 %v526, %v182
    %v557 = vmul.f32 %v531, %v187
    %v558 = vmul.f32 %v536, %v192
    %v559 = vmul.f32 %v541, %v197
    %v560 = vmul.f32 %v546, %v202
    %v561 = vmul.f32 %v551, %v207
    %v562 = vsel %vm80, %v554, 0.0
    %v563 = vrot.slane %v562, 4
    %v564 = vadd.f32 %v562, %v563
    %v565 = vrot.slane %v564, 2
    %v566 = vadd.f32 %v564, %v565
    %v567 = vrot.slane %v566, 1
    %v568 = vadd.f32 %v566, %v567
    %v569 = vsel %vm80, %v555, 0.0
    %v570 = vrot.slane %v569, 4
    %v571 = vadd.f32 %v569, %v570
    %v572 = vrot.slane %v571, 2
    %v573 = vadd.f32 %v571, %v572
    %v574 = vrot.slane %v573, 1
    %v575 = vadd.f32 %v573, %v574
    %v576 = vsel %vm80, %v556, 0.0
    %v577 = vrot.slane %v576, 4
    %v578 = vadd.f32 %v576, %v577
    %v579 = vrot.slane %v578, 2
    %v580 = vadd.f32 %v578, %v579
    %v581 = vrot.slane %v580, 1
    %v582 = vadd.f32 %v580, %v581
    %v583 = vsel %vm80, %v557, 0.0
    %v584 = vrot.slane %v583, 4
    %v585 = vadd.f32 %v583, %v584
    %v586 = vrot.slane %v585, 2
    %v587 = vadd.f32 %v585, %v586
    %v588 = vrot.slane %v587, 1
    %v589 = vadd.f32 %v587, %v588
    %v590 = vsel %vm80, %v558, 0.0
    %v591 = vrot.slane %v590, 4
    %v592 = vadd.f32 %v590, %v591
    %v593 = vrot.slane %v592, 2
    %v594 = vadd.f32 %v592, %v593
    %v595 = vrot.slane %v594, 1
    %v596 = vadd.f32 %v594, %v595
    %v597 = vsel %vm80, %v559, 0.0
    %v598 = vrot.slane %v597, 4
    %v599 = vadd.f32 %v597, %v598
    %v600 = vrot.slane %v599, 2
    %v601 = vadd.f32 %v599, %v600
    %v602 = vrot.slane %v601, 1
    %v603 = vadd.f32 %v601, %v602
    %v604 = vsel %vm80, %v560, 0.0
    %v605 = vrot.slane %v604, 4
    %v606 = vadd.f32 %v604, %v605
    %v607 = vrot.slane %v606, 2
    %v608 = vadd.f32 %v606, %v607
    %v609 = vrot.slane %v608, 1
    %v610 = vadd.f32 %v608, %v609
    %v611 = vsel %vm80, %v561, 0.0
    %v612 = vrot.slane %v611, 4
    %v613 = vadd.f32 %v611, %v612
    %v614 = vrot.slane %v613, 2
    %v615 = vadd.f32 %v613, %v614
    %v616 = vrot.slane %v615, 1
    %v617 = vadd.f32 %v615, %v616
    %vm626 = vcmask 1041409
    %v627 = vsel %vm626, %v360, %v353
    %vm628 = vcmask 1042434
    %v629 = vsel %vm628, %v367, %v627
    %vm630 = vcmask 1043459
    %v631 = vsel %vm630, %v374, %v629
    %vm632 = vcmask 1044484
    %v633 = vsel %vm632, %v381, %v631
    %vm634 = vcmask 1045509
    %v635 = vsel %vm634, %v388, %v633
    %vm636 = vcmask 1046534
    %v637 = vsel %vm636, %v395, %v635
    %vm638 = vcmask 1047559
    %v639 = vsel %vm638, %v402, %v637
    %640 = vrot.lane.b32.xlu0 %v639, 96
    %v641 = vpop.permute.xlu0 %640
    %v642 = vsel %vm428, %v641, 0
    %644 = vmatprep.subr.mxu0 0.0
    %645 = vmatpush1.msra.mxu0 %v447
    %646 = vmatprep.subr.mxu0 0.0
    %647 = vmatpush1.msra.mxu0 0.0
    %648 = vmatprep.subr.mxu0 0.0
    %649 = vmatpush1.msra.mxu0 0.0
    %650 = vmatprep.subr.mxu0 0.0
    %651 = vmatpush1.msra.mxu0 0.0
    %652 = vmatprep.subr.mxu0 0.0
    %653 = vmatpush1.msra.mxu0 0.0
    %654 = vmatprep.subr.mxu0 0.0
    %655 = vmatpush1.msra.mxu0 0.0
    %656 = vmatprep.subr.mxu0 0.0
    %657 = vmatpush1.msra.mxu0 0.0
    %658 = vmatprep.subr.mxu0 0.0
    %659 = vmatpush1.msra.mxu0 0.0
    %660 = vmatprep.subr.mxu0 0.0
    %661 = vmatpush1.msra.mxu0 0.0
    %662 = vmatprep.subr.mxu0 0.0
    %663 = vmatpush1.msra.mxu0 0.0
    %664 = vmatprep.subr.mxu0 0.0
    %665 = vmatpush1.msra.mxu0 0.0
    %666 = vmatprep.subr.mxu0 0.0
    %667 = vmatpush1.msra.mxu0 0.0
    %668 = vmatprep.subr.mxu0 0.0
    %669 = vmatpush1.msra.mxu0 0.0
    %670 = vmatprep.subr.mxu0 0.0
    %671 = vmatpush1.msra.mxu0 0.0
    %672 = vmatprep.subr.mxu0 0.0
    %673 = vmatpush1.msra.mxu0 0.0
    %674 = vmatprep.subr.mxu0 0.0
    %675 = vmatpush1.msra.mxu0 0.0
    %676 = vmatprep.subr.mxu0 0.0
    %677 = vmatpush1.msra.mxu0 0.0
    %678 = vmatprep.subr.mxu0 0.0
    %679 = vmatpush1.msra.mxu0 0.0
    %680 = vmatprep.subr.mxu0 0.0
    %681 = vmatpush1.msra.mxu0 0.0
    %682 = vmatprep.subr.mxu0 0.0
    %683 = vmatpush1.msra.mxu0 0.0
    %684 = vmatprep.subr.mxu0 0.0
    %685 = vmatpush1.msra.mxu0 0.0
    %686 = vmatprep.subr.mxu0 0.0
    %687 = vmatpush1.msra.mxu0 0.0
    %688 = vmatprep.subr.mxu0 0.0
    %689 = vmatpush1.msra.mxu0 0.0
    %690 = vmatprep.subr.mxu0 0.0
    %691 = vmatpush1.msra.mxu0 0.0
    %692 = vmatprep.subr.mxu0 0.0
    %693 = vmatpush1.msra.mxu0 0.0
    %694 = vmatprep.subr.mxu0 0.0
    %695 = vmatpush1.msra.mxu0 0.0
    %696 = vmatprep.subr.mxu0 0.0
    %697 = vmatpush1.msra.mxu0 0.0
    %698 = vmatprep.subr.mxu0 0.0
    %699 = vmatpush1.msra.mxu0 0.0
    %700 = vmatprep.subr.mxu0 0.0
    %701 = vmatpush1.msra.mxu0 0.0
    %702 = vmatprep.subr.mxu0 0.0
    %703 = vmatpush1.msra.mxu0 0.0
    %704 = vmatprep.subr.mxu0 0.0
    %705 = vmatpush1.msra.mxu0 0.0
    %706 = vmatprep.subr.mxu0 0.0
    %707 = vmatpush1.msra.mxu0 0.0
    %708 = vmatprep.mubr.f32.mxu0 0.0
    %709 = vmatmul.mubr.f32.gmra.mrb[0].mxu0 %v642
    %v710 = vpop.f32.mrb[0].mxu0
    %v711 = vadd.f32 0.0, %v710
    %v712 = vpop.f32.mrb[0].mxu0
    %713 = vdwg.mxu0
    %v714 = vrcp.pop %v711
    %v716 = vrot.slane %v714, 1
    %v717 = vrot.slane %v714, 2
    %v718 = vrot.slane %v714, 3
    %v719 = vrot.slane %v714, 4
    %v720 = vrot.slane %v714, 5
    %v721 = vrot.slane %v714, 6
    %v722 = vrot.slane %v714, 7
    %v731 = vmul.f32 %v568, %v714
    %v732 = vmul.f32 %v575, %v716
    %v733 = vmul.f32 %v582, %v717
    %v734 = vmul.f32 %v589, %v718
    %v735 = vmul.f32 %v596, %v719
    %v736 = vmul.f32 %v603, %v720
    %v737 = vmul.f32 %v610, %v721
    %v738 = vmul.f32 %v617, %v722
    %v739 = vld [vmem:[#allocation5] sm:$0xff]
    %v740 = vld [vmem:[#allocation5 + $0x8] sm:$0xff]
    %v741 = vld [vmem:[#allocation5 + $0x10] sm:$0xff]
    %v742 = vld [vmem:[#allocation5 + $0x18] sm:$0xff]
    %v743 = vld [vmem:[%s6] sm:$0x1]
    %v745 = vlaneseq
    %v746 = vshrl.u32 %v745, 7
    %v747 = vsub.s32 0, %v746
    %v748 = vrot.slane %v743, %v747
    %v758 = vrot.slane %v732, 7
    %v759 = vsel %vm626, %v758, %v731
    %v760 = vrot.slane %v733, 6
    %v761 = vsel %vm628, %v760, %v759
    %v762 = vrot.slane %v734, 5
    %v763 = vsel %vm630, %v762, %v761
    %v764 = vrot.slane %v735, 4
    %v765 = vsel %vm632, %v764, %v763
    %v766 = vrot.slane %v736, 3
    %v767 = vsel %vm634, %v766, %v765
    %v768 = vrot.slane %v737, 2
    %v769 = vsel %vm636, %v768, %v767
    %v770 = vrot.slane %v738, 1
    %v771 = vsel %vm638, %v770, %v769
    %v772 = vsel %vm80, %v771, 0
    %774 = vmatprep.subr.mxu0 0.0
    %775 = vmatpush1.msra.mxu0 %v739
    %776 = vmatprep.subr.mxu0 0.0
    %777 = vmatpush1.msra.mxu0 %v740
    %778 = vmatprep.subr.mxu0 0.0
    %779 = vmatpush1.msra.mxu0 %v741
    %780 = vmatprep.subr.mxu0 0.0
    %781 = vmatpush1.msra.mxu0 %v742
    %782 = vmatprep.subr.mxu0 0.0
    %783 = vmatpush1.msra.mxu0 0.0
    %784 = vmatprep.subr.mxu0 0.0
    %785 = vmatpush1.msra.mxu0 0.0
    %786 = vmatprep.subr.mxu0 0.0
    %787 = vmatpush1.msra.mxu0 0.0
    %788 = vmatprep.subr.mxu0 0.0
    %789 = vmatpush1.msra.mxu0 0.0
    %790 = vmatprep.subr.mxu0 0.0
    %791 = vmatpush1.msra.mxu0 0.0
    %792 = vmatprep.subr.mxu0 0.0
    %793 = vmatpush1.msra.mxu0 0.0
    %794 = vmatprep.subr.mxu0 0.0
    %795 = vmatpush1.msra.mxu0 0.0
    %796 = vmatprep.subr.mxu0 0.0
    %797 = vmatpush1.msra.mxu0 0.0
    %798 = vmatprep.subr.mxu0 0.0
    %799 = vmatpush1.msra.mxu0 0.0
    %800 = vmatprep.subr.mxu0 0.0
    %801 = vmatpush1.msra.mxu0 0.0
    %802 = vmatprep.subr.mxu0 0.0
    %803 = vmatpush1.msra.mxu0 0.0
    %804 = vmatprep.subr.mxu0 0.0
    %805 = vmatpush1.msra.mxu0 0.0
    %806 = vmatprep.subr.mxu0 0.0
    %807 = vmatpush1.msra.mxu0 0.0
    %808 = vmatprep.subr.mxu0 0.0
    %809 = vmatpush1.msra.mxu0 0.0
    %810 = vmatprep.subr.mxu0 0.0
    %811 = vmatpush1.msra.mxu0 0.0
    %812 = vmatprep.subr.mxu0 0.0
    %813 = vmatpush1.msra.mxu0 0.0
    %814 = vmatprep.subr.mxu0 0.0
    %815 = vmatpush1.msra.mxu0 0.0
    %816 = vmatprep.subr.mxu0 0.0
    %817 = vmatpush1.msra.mxu0 0.0
    %818 = vmatprep.subr.mxu0 0.0
    %819 = vmatpush1.msra.mxu0 0.0
    %820 = vmatprep.subr.mxu0 0.0
    %821 = vmatpush1.msra.mxu0 0.0
    %822 = vmatprep.subr.mxu0 0.0
    %823 = vmatpush1.msra.mxu0 0.0
    %824 = vmatprep.subr.mxu0 0.0
    %825 = vmatpush1.msra.mxu0 0.0
    %826 = vmatprep.subr.mxu0 0.0
    %827 = vmatpush1.msra.mxu0 0.0
    %828 = vmatprep.subr.mxu0 0.0
    %829 = vmatpush1.msra.mxu0 0.0
    %830 = vmatprep.subr.mxu0 0.0
    %831 = vmatpush1.msra.mxu0 0.0
    %832 = vmatprep.subr.mxu0 0.0
    %833 = vmatpush1.msra.mxu0 0.0
    %834 = vmatprep.subr.mxu0 0.0
    %835 = vmatpush1.msra.mxu0 0.0
    %836 = vmatprep.subr.mxu0 0.0
    %837 = vmatpush1.msra.mxu0 0.0
    %838 = vmatprep.mubr.f32.mxu0 0.0
    %839 = vmatmul.mubr.f32.gmra.mrb[0].mxu0 %v772
    %v840 = vpop.f32.mrb[0].mxu0
    %v841 = vadd.f32 %v748, %v840
    %v842 = vpop.f32.mrb[0].mxu0
    %843 = vdwg.mxu0
    %v844 = vsel %vm80, %v841, 0.0
    %845 = vadd.xlane.f32.xlu0 %v844
    %v846 = vpop.xlane.xlu0 %845
    %v847 = vrcp.pop 32.0
    %v848 = vmul.f32 %v846, %v847
    %v849 = vsub.f32 %v841, %v848
    %v850 = vmul.f32 %v849, %v849
    %v851 = vsel %vm80, %v850, 0.0
    %852 = vadd.xlane.f32.xlu0 %v851
    %v853 = vpop.xlane.xlu0 %852
    %v854 = vmul.f32 %v853, %v847
    %v855 = vadd.f32 %v854, 1e-05
    %v856 = vrsqrt.pop %v855
    %v857 = vmul.f32 %v849, %v856
    %v858 = vld [vmem:[%s7] sm:$0x1]
    %v860 = vlaneseq
    %v861 = vshrl.u32 %v860, 7
    %v862 = vsub.s32 0, %v861
    %v863 = vrot.slane %v858, %v862
    %v865 = vmul.f32 %v857, %v863
    %v866 = vld [vmem:[%s8] sm:$0x1]
    %v868 = vlaneseq
    %v869 = vshrl.u32 %v868, 7
    %v870 = vsub.s32 0, %v869
    %v871 = vrot.slane %v866, %v870
    %v873 = vadd.f32 %v865, %v871
    %874 = vst.msk [vmem:[#allocation7] sm:$0xff] %vm80, %v873
    // Predicated region
    $region46: #{tpu_custom_call.1} parent=1 // pred_check
      _
    $region47: #{tpu_custom_call.1} parent=1 // pred_check_branch
      %876 = sbr.rel (0) target = $region49
    $region48: #{tpu_custom_call.1} parent=1 // pred_region
      %s878 = ssub.s32 128, 128
      %879 = vsyncadd [#allocation4], %s878
      %s881 = sshll.u32 [#allocation7], 4
      %s882 = int_to_ptr.vmem [resolvable:$true] %s881
      %884 = dma.vmem_to_hbm [thread:$0]  %s882, 128, %s9, [#allocation4]
    $region49: #{tpu_custom_call.1} parent=1 // pred_fallthru
      _
    // Predicated region
    $region50: #{tpu_custom_call.1} parent=1 // pred_check
      _
    $region51: #{tpu_custom_call.1} parent=1 // pred_check_branch
      %886 = sbr.rel (0) target = $region53
    $region52: #{tpu_custom_call.1} parent=1 // pred_region
      %887 = dma.done [#allocation4], 128
    $region53: #{tpu_custom_call.1} parent=1 // pred_fallthru
      _
    %888 = vsyncpa [#allocation3], 1
    %889 = vsyncpa [#allocation6], 1
    %890 = vsyncpa [#allocation4], 1

// kernel: tpu_custom_call.1
$region0: #{tpu_custom_call.1}
  #allocation0 [shape = 'u32[]', space=smem, size = 0x4, offset = 0x4, fixed_abs, tag = 'smem constant byte address 0x4 - core index']
  #allocation1 [shape = 'u32[144,128]{1,0:T(1,128)}', space=vmem, size = 0x12000, scoped, tag = 'internal scratch']
  %s0 = inlined_call_operand.vmem [shape: f32[8,8,32], index: 0, kind: input, shape index: {}]
  %s1 = inlined_call_operand.vmem [shape: f32[8,8,1], index: 1, kind: input, shape index: {}]
  %s2 = inlined_call_operand.hbm [shape: f32[32,128], index: 2, kind: input, shape index: {}]
  %s3 = inlined_call_operand.vmem [shape: f32[1,128], index: 3, kind: input, shape index: {}]
  %s4 = inlined_call_operand.vmem [shape: f32[4,32], index: 4, kind: input, shape index: {}]
  %s5 = inlined_call_operand.hbm [shape: f32[32,32], index: 5, kind: input, shape index: {}]
  %s6 = inlined_call_operand.vmem [shape: f32[1,32], index: 6, kind: input, shape index: {}]
  %s7 = inlined_call_operand.vmem [shape: f32[1,32], index: 7, kind: input, shape index: {}]
  %s8 = inlined_call_operand.vmem [shape: f32[1,32], index: 8, kind: input, shape index: {}]
  %s9 = inlined_call_operand.hbm [shape: f32[8,32], index: 9, kind: output, shape index: {}]
  %s10 = sld [smem:[#allocation0]]
  $region54: #{tpu_custom_call.1} parent=0
    _
  %s12 = ssub.s32 1, %s10
  %s13 = scalar_select 0, %s12, %s10
  $region1: #{tpu_custom_call.1} parent=0
    #allocation2 [shape = 'u8[16384]{0}', space=vmem, size = 0x4000, scoped, tag = 'input window, operand 2, single buffered']
    #allocation3 [shape = 's32[1]{0}', space=sflag, size = 0x4, scoped, tag = 'scoped memory for tpu_custom_call.1']
    #allocation4 [shape = 's32[1]{0}', space=sflag, size = 0x4, scoped, tag = 'scoped memory for tpu_custom_call.1']
    #allocation5 [shape = 'u8[16384]{0}', space=vmem, size = 0x4000, scoped, tag = 'input window, operand 5, single buffered']
    #allocation6 [shape = 's32[1]{0}', space=sflag, size = 0x4, scoped, tag = 'scoped memory for tpu_custom_call.1']
    #allocation7 [shape = 'u8[4096]{0}', space=vmem, size = 0x1000, scoped, tag = 'output window, operand 0, single buffered']
    %14 = vsyncpa [#allocation3], 0
    %15 = vsyncpa [#allocation6], 0
    %16 = vsyncpa [#allocation4], 0
    // Predicated region
    $region2: #{tpu_custom_call.1} parent=1 // pred_check
      _
    $region3: #{tpu_custom_call.1} parent=1 // pred_check_branch
      %18 = sbr.rel (0) target = $region5
    $region4: #{tpu_custom_call.1} parent=1 // pred_region
      _
    $region5: #{tpu_custom_call.1} parent=1 // pred_fallthru
      _
    // Predicated region
    $region6: #{tpu_custom_call.1} parent=1 // pred_check
      _
    $region7: #{tpu_custom_call.1} parent=1 // pred_check_branch
      %20 = sbr.rel (0) target = $region9
    $region8: #{tpu_custom_call.1} parent=1 // pred_region
      _
    $region9: #{tpu_custom_call.1} parent=1 // pred_fallthru
      _
    // Predicated region
    $region10: #{tpu_custom_call.1} parent=1 // pred_check
      _
    $region11: #{tpu_custom_call.1} parent=1 // pred_check_branch
      %22 = sbr.rel (0) target = $region13
    $region12: #{tpu_custom_call.1} parent=1 // pred_region
      %s24 = ssub.s32 512, 512
      %25 = vsyncadd [#allocation3], %s24
      %s26 = sshll.u32 [#allocation2], 4
      %s27 = int_to_ptr.vmem [resolvable:$true] %s26
      %32 = dma.hbm_to_vmem [thread:$0]  %s2, 512, %s27, [#allocation3], 128, 128, 8
    $region13: #{tpu_custom_call.1} parent=1 // pred_fallthru
      _
    // Predicated region
    $region14: #{tpu_custom_call.1} parent=1 // pred_check
      _
    $region15: #{tpu_custom_call.1} parent=1 // pred_check_branch
      %34 = sbr.rel (0) target = $region17
    $region16: #{tpu_custom_call.1} parent=1 // pred_region
      _
    $region17: #{tpu_custom_call.1} parent=1 // pred_fallthru
      _
    // Predicated region
    $region18: #{tpu_custom_call.1} parent=1 // pred_check
      _
    $region19: #{tpu_custom_call.1} parent=1 // pred_check_branch
      %36 = sbr.rel (0) target = $region21
    $region20: #{tpu_custom_call.1} parent=1 // pred_region
      _
    $region21: #{tpu_custom_call.1} parent=1 // pred_fallthru
      _
    // Predicated region
    $region22: #{tpu_custom_call.1} parent=1 // pred_check
      _
    $region23: #{tpu_custom_call.1} parent=1 // pred_check_branch
      %38 = sbr.rel (0) target = $region25
    $region24: #{tpu_custom_call.1} parent=1 // pred_region
      %s40 = ssub.s32 512, 512
      %41 = vsyncadd [#allocation6], %s40
      %s42 = sshll.u32 [#allocation5], 4
      %s43 = int_to_ptr.vmem [resolvable:$true] %s42
      %48 = dma.hbm_to_vmem [thread:$0]  %s5, 512, %s43, [#allocation6], 128, 128, 8
    $region25: #{tpu_custom_call.1} parent=1 // pred_fallthru
      _
    // Predicated region
    $region26: #{tpu_custom_call.1} parent=1 // pred_check
      _
    $region27: #{tpu_custom_call.1} parent=1 // pred_check_branch
      %50 = sbr.rel (0) target = $region29
    $region28: #{tpu_custom_call.1} parent=1 // pred_region
      _
    $region29: #{tpu_custom_call.1} parent=1 // pred_fallthru
      _
    // Predicated region
    $region30: #{tpu_custom_call.1} parent=1 // pred_check
      _
    $region31: #{tpu_custom_call.1} parent=1 // pred_check_branch
      %52 = sbr.rel (0) target = $region33
    $region32: #{tpu_custom_call.1} parent=1 // pred_region
      _
    $region33: #{tpu_custom_call.1} parent=1 // pred_fallthru
      _
    // Predicated region
    $region34: #{tpu_custom_call.1} parent=1 // pred_check
      _
    $region35: #{tpu_custom_call.1} parent=1 // pred_check_branch
      %54 = sbr.rel (0) target = $region37
    $region36: #{tpu_custom_call.1} parent=1 // pred_region
      _
    $region37: #{tpu_custom_call.1} parent=1 // pred_fallthru
      _
    // Predicated region
    $region38: #{tpu_custom_call.1} parent=1 // pred_check
      _
    $region39: #{tpu_custom_call.1} parent=1 // pred_check_branch
      %56 = sbr.rel (0) target = $region41
    $region40: #{tpu_custom_call.1} parent=1 // pred_region
      %57 = dma.done [#allocation3], 512
    $region41: #{tpu_custom_call.1} parent=1 // pred_fallthru
      _
    // Predicated region
    $region42: #{tpu_custom_call.1} parent=1 // pred_check
      _
    $region43: #{tpu_custom_call.1} parent=1 // pred_check_branch
      %59 = sbr.rel (0) target = $region45
    $region44: #{tpu_custom_call.1} parent=1 // pred_region
      %60 = dma.done [#allocation6], 512
    $region45: #{tpu_custom_call.1} parent=1 // pred_fallthru
      _
    %v61 = vld [vmem:[%s0] sm:$0xff]
    %v62 = vld [vmem:[%s0 + $0x8] sm:$0xff]
    %v63 = vld [vmem:[%s0 + $0x10] sm:$0xff]
    %v64 = vld [vmem:[%s0 + $0x18] sm:$0xff]
    %v65 = vld [vmem:[%s0 + $0x20] sm:$0xff]
    %v66 = vld [vmem:[%s0 + $0x28] sm:$0xff]
    %v67 = vld [vmem:[%s0 + $0x30] sm:$0xff]
    %v68 = vld [vmem:[%s0 + $0x38] sm:$0xff]
    %v69 = vld [vmem:[#allocation2] sm:$0xff]
    %v70 = vld [vmem:[#allocation2 + $0x8] sm:$0xff]
    %v71 = vld [vmem:[#allocation2 + $0x10] sm:$0xff]
    %v72 = vld [vmem:[#allocation2 + $0x18] sm:$0xff]
    %v73 = vld [vmem:[%s3] sm:$0x1]
    %v75 = vlaneseq
    %v76 = vshrl.u32 %v75, 7
    %v77 = vsub.s32 0, %v76
    %v78 = vrot.slane %v73, %v77
    %vm80 = vcmask 261120
    %v82 = vsel %vm80, %v61, 0
    %v85 = vsel %vm80, %v62, 0
    %v88 = vsel %vm80, %v63, 0
    %v91 = vsel %vm80, %v64, 0
    %v94 = vsel %vm80, %v65, 0
    %v97 = vsel %vm80, %v66, 0
    %v100 = vsel %vm80, %v67, 0
    %v103 = vsel %vm80, %v68, 0
    %105 = vmatprep.subr.mxu0 0.0
    %106 = vmatpush1.msra.mxu0 %v69
    %107 = vmatprep.subr.mxu0 0.0
    %108 = vmatpush1.msra.mxu0 %v70
    %109 = vmatprep.subr.mxu0 0.0
    %110 = vmatpush1.msra.mxu0 %v71
    %111 = vmatprep.subr.mxu0 0.0
    %112 = vmatpush1.msra.mxu0 %v72
    %113 = vmatprep.subr.mxu0 0.0
    %114 = vmatpush1.msra.mxu0 0.0
    %115 = vmatprep.subr.mxu0 0.0
    %116 = vmatpush1.msra.mxu0 0.0
    %117 = vmatprep.subr.mxu0 0.0
    %118 = vmatpush1.msra.mxu0 0.0
    %119 = vmatprep.subr.mxu0 0.0
    %120 = vmatpush1.msra.mxu0 0.0
    %121 = vmatprep.subr.mxu0 0.0
    %122 = vmatpush1.msra.mxu0 0.0
    %123 = vmatprep.subr.mxu0 0.0
    %124 = vmatpush1.msra.mxu0 0.0
    %125 = vmatprep.subr.mxu0 0.0
    %126 = vmatpush1.msra.mxu0 0.0
    %127 = vmatprep.subr.mxu0 0.0
    %128 = vmatpush1.msra.mxu0 0.0
    %129 = vmatprep.subr.mxu0 0.0
    %130 = vmatpush1.msra.mxu0 0.0
    %131 = vmatprep.subr.mxu0 0.0
    %132 = vmatpush1.msra.mxu0 0.0
    %133 = vmatprep.subr.mxu0 0.0
    %134 = vmatpush1.msra.mxu0 0.0
    %135 = vmatprep.subr.mxu0 0.0
    %136 = vmatpush1.msra.mxu0 0.0
    %137 = vmatprep.subr.mxu0 0.0
    %138 = vmatpush1.msra.mxu0 0.0
    %139 = vmatprep.subr.mxu0 0.0
    %140 = vmatpush1.msra.mxu0 0.0
    %141 = vmatprep.subr.mxu0 0.0
    %142 = vmatpush1.msra.mxu0 0.0
    %143 = vmatprep.subr.mxu0 0.0
    %144 = vmatpush1.msra.mxu0 0.0
    %145 = vmatprep.subr.mxu0 0.0
    %146 = vmatpush1.msra.mxu0 0.0
    %147 = vmatprep.subr.mxu0 0.0
    %148 = vmatpush1.msra.mxu0 0.0
    %149 = vmatprep.subr.mxu0 0.0
    %150 = vmatpush1.msra.mxu0 0.0
    %151 = vmatprep.subr.mxu0 0.0
    %152 = vmatpush1.msra.mxu0 0.0
    %153 = vmatprep.subr.mxu0 0.0
    %154 = vmatpush1.msra.mxu0 0.0
    %155 = vmatprep.subr.mxu0 0.0
    %156 = vmatpush1.msra.mxu0 0.0
    %157 = vmatprep.subr.mxu0 0.0
    %158 = vmatpush1.msra.mxu0 0.0
    %159 = vmatprep.subr.mxu0 0.0
    %160 = vmatpush1.msra.mxu0 0.0
    %161 = vmatprep.subr.mxu0 0.0
    %162 = vmatpush1.msra.mxu0 0.0
    %163 = vmatprep.subr.mxu0 0.0
    %164 = vmatpush1.msra.mxu0 0.0
    %165 = vmatprep.subr.mxu0 0.0
    %166 = vmatpush1.msra.mxu0 0.0
    %167 = vmatprep.subr.mxu0 0.0
    %168 = vmatpush1.msra.mxu0 0.0
    %169 = vmatprep.mubr.f32.mxu0 0.0
    %170 = vmatmul.mubr.f32.gmra.mrb[0].mxu0 %v82
    %v171 = vpop.f32.mrb[0].mxu0
    %v172 = vadd.f32 %v78, %v171
    %v173 = vpop.f32.mrb[0].mxu0
    %174 = vmatprep.mubr.f32.mxu0 0.0
    %175 = vmatmul.mubr.f32.gmra.mrb[0].mxu0 %v85
    %v176 = vpop.f32.mrb[0].mxu0
    %v177 = vadd.f32 %v78, %v176
    %v178 = vpop.f32.mrb[0].mxu0
    %179 = vmatprep.mubr.f32.mxu0 0.0
    %180 = vmatmul.mubr.f32.gmra.mrb[0].mxu0 %v88
    %v181 = vpop.f32.mrb[0].mxu0
    %v182 = vadd.f32 %v78, %v181
    %v183 = vpop.f32.mrb[0].mxu0
    %184 = vmatprep.mubr.f32.mxu0 0.0
    %185 = vmatmul.mubr.f32.gmra.mrb[0].mxu0 %v91
    %v186 = vpop.f32.mrb[0].mxu0
    %v187 = vadd.f32 %v78, %v186
    %v188 = vpop.f32.mrb[0].mxu0
    %189 = vmatprep.mubr.f32.mxu0 0.0
    %190 = vmatmul.mubr.f32.gmra.mrb[0].mxu0 %v94
    %v191 = vpop.f32.mrb[0].mxu0
    %v192 = vadd.f32 %v78, %v191
    %v193 = vpop.f32.mrb[0].mxu0
    %194 = vmatprep.mubr.f32.mxu0 0.0
    %195 = vmatmul.mubr.f32.gmra.mrb[0].mxu0 %v97
    %v196 = vpop.f32.mrb[0].mxu0
    %v197 = vadd.f32 %v78, %v196
    %v198 = vpop.f32.mrb[0].mxu0
    %199 = vmatprep.mubr.f32.mxu0 0.0
    %200 = vmatmul.mubr.f32.gmra.mrb[0].mxu0 %v100
    %v201 = vpop.f32.mrb[0].mxu0
    %v202 = vadd.f32 %v78, %v201
    %v203 = vpop.f32.mrb[0].mxu0
    %204 = vmatprep.mubr.f32.mxu0 0.0
    %205 = vmatmul.mubr.f32.gmra.mrb[0].mxu0 %v103
    %v206 = vpop.f32.mrb[0].mxu0
    %v207 = vadd.f32 %v78, %v206
    %v208 = vpop.f32.mrb[0].mxu0
    %209 = vdwg.mxu0
    %v210 = vld [vmem:[%s1] sm:$0xff]
    %v211 = vld [vmem:[%s1 + $0x8] sm:$0xff]
    %v212 = vld [vmem:[%s1 + $0x10] sm:$0xff]
    %v213 = vld [vmem:[%s1 + $0x18] sm:$0xff]
    %v214 = vld [vmem:[%s1 + $0x20] sm:$0xff]
    %v215 = vld [vmem:[%s1 + $0x28] sm:$0xff]
    %v216 = vld [vmem:[%s1 + $0x30] sm:$0xff]
    %v217 = vld [vmem:[%s1 + $0x38] sm:$0xff]
    %219 = vset.pattern.permute.xlu0 0
    %220 = vperm.xlu0 %219, %v210
    %v221 = vpop.permute.xlu0 %220
    %224 = vset.pattern.permute.xlu0 0
    %225 = vperm.xlu0 %224, %v211
    %v226 = vpop.permute.xlu0 %225
    %229 = vset.pattern.permute.xlu0 0
    %230 = vperm.xlu0 %229, %v212
    %v231 = vpop.permute.xlu0 %230
    %234 = vset.pattern.permute.xlu0 0
    %235 = vperm.xlu0 %234, %v213
    %v236 = vpop.permute.xlu0 %235
    %239 = vset.pattern.permute.xlu0 0
    %240 = vperm.xlu0 %239, %v214
    %v241 = vpop.permute.xlu0 %240
    %244 = vset.pattern.permute.xlu0 0
    %245 = vperm.xlu0 %244, %v215
    %v246 = vpop.permute.xlu0 %245
    %249 = vset.pattern.permute.xlu0 0
    %250 = vperm.xlu0 %249, %v216
    %v251 = vpop.permute.xlu0 %250
    %254 = vset.pattern.permute.xlu0 0
    %255 = vperm.xlu0 %254, %v217
    %v256 = vpop.permute.xlu0 %255
    %v258 = vadd.f32 %v172, %v221
    %v259 = vadd.f32 %v177, %v226
    %v260 = vadd.f32 %v182, %v231
    %v261 = vadd.f32 %v187, %v236
    %v262 = vadd.f32 %v192, %v241
    %v263 = vadd.f32 %v197, %v246
    %v264 = vadd.f32 %v202, %v251
    %v265 = vadd.f32 %v207, %v256
    %vm266 = vcmask 294144
    %v267 = vsel %vm266, %v258, -inf
    %v268 = vrot.slane %v267, 4
    %v269 = vmax.f32 %v267, %v268
    %v270 = vrot.slane %v269, 2
    %v271 = vmax.f32 %v269, %v270
    %v272 = vrot.slane %v271, 1
    %v273 = vmax.f32 %v271, %v272
    %v274 = vsel %vm266, %v259, -inf
    %v275 = vrot.slane %v274, 4
    %v276 = vmax.f32 %v274, %v275
    %v277 = vrot.slane %v276, 2
    %v278 = vmax.f32 %v276, %v277
    %v279 = vrot.slane %v278, 1
    %v280 = vmax.f32 %v278, %v279
    %v281 = vsel %vm266, %v260, -inf
    %v282 = vrot.slane %v281, 4
    %v283 = vmax.f32 %v281, %v282
    %v284 = vrot.slane %v283, 2
    %v285 = vmax.f32 %v283, %v284
    %v286 = vrot.slane %v285, 1
    %v287 = vmax.f32 %v285, %v286
    %v288 = vsel %vm266, %v261, -inf
    %v289 = vrot.slane %v288, 4
    %v290 = vmax.f32 %v288, %v289
    %v291 = vrot.slane %v290, 2
    %v292 = vmax.f32 %v290, %v291
    %v293 = vrot.slane %v292, 1
    %v294 = vmax.f32 %v292, %v293
    %v295 = vsel %vm266, %v262, -inf
    %v296 = vrot.slane %v295, 4
    %v297 = vmax.f32 %v295, %v296
    %v298 = vrot.slane %v297, 2
    %v299 = vmax.f32 %v297, %v298
    %v300 = vrot.slane %v299, 1
    %v301 = vmax.f32 %v299, %v300
    %v302 = vsel %vm266, %v263, -inf
    %v303 = vrot.slane %v302, 4
    %v304 = vmax.f32 %v302, %v303
    %v305 = vrot.slane %v304, 2
    %v306 = vmax.f32 %v304, %v305
    %v307 = vrot.slane %v306, 1
    %v308 = vmax.f32 %v306, %v307
    %v309 = vsel %vm266, %v264, -inf
    %v310 = vrot.slane %v309, 4
    %v311 = vmax.f32 %v309, %v310
    %v312 = vrot.slane %v311, 2
    %v313 = vmax.f32 %v311, %v312
    %v314 = vrot.slane %v313, 1
    %v315 = vmax.f32 %v313, %v314
    %v316 = vsel %vm266, %v265, -inf
    %v317 = vrot.slane %v316, 4
    %v318 = vmax.f32 %v316, %v317
    %v319 = vrot.slane %v318, 2
    %v320 = vmax.f32 %v318, %v319
    %v321 = vrot.slane %v320, 1
    %v322 = vmax.f32 %v320, %v321
    %v323 = vsub.f32 %v258, %v273
    %v324 = vsub.f32 %v259, %v280
    %v325 = vsub.f32 %v260, %v287
    %v326 = vsub.f32 %v261, %v294
    %v327 = vsub.f32 %v262, %v301
    %v328 = vsub.f32 %v263, %v308
    %v329 = vsub.f32 %v264, %v315
    %v330 = vsub.f32 %v265, %v322
    %v331 = vmul.f32 %v323, 1.442695
    %v332 = vpow.pop %v331
    %v333 = vmul.f32 %v324, 1.442695
    %v334 = vpow.pop %v333
    %v335 = vmul.f32 %v325, 1.442695
    %v336 = vpow.pop %v335
    %v337 = vmul.f32 %v326, 1.442695
    %v338 = vpow.pop %v337
    %v339 = vmul.f32 %v327, 1.442695
    %v340 = vpow.pop %v339
    %v341 = vmul.f32 %v328, 1.442695
    %v342 = vpow.pop %v341
    %v343 = vmul.f32 %v329, 1.442695
    %v344 = vpow.pop %v343
    %v345 = vmul.f32 %v330, 1.442695
    %v346 = vpow.pop %v345
    %v347 = vsel %vm266, %v332, 0.0
    %v348 = vrot.slane %v347, 4
    %v349 = vadd.f32 %v347, %v348
    %v350 = vrot.slane %v349, 2
    %v351 = vadd.f32 %v349, %v350
    %v352 = vrot.slane %v351, 1
    %v353 = vadd.f32 %v351, %v352
    %v354 = vsel %vm266, %v334, 0.0
    %v355 = vrot.slane %v354, 4
    %v356 = vadd.f32 %v354, %v355
    %v357 = vrot.slane %v356, 2
    %v358 = vadd.f32 %v356, %v357
    %v359 = vrot.slane %v358, 1
    %v360 = vadd.f32 %v358, %v359
    %v361 = vsel %vm266, %v336, 0.0
    %v362 = vrot.slane %v361, 4
    %v363 = vadd.f32 %v361, %v362
    %v364 = vrot.slane %v363, 2
    %v365 = vadd.f32 %v363, %v364
    %v366 = vrot.slane %v365, 1
    %v367 = vadd.f32 %v365, %v366
    %v368 = vsel %vm266, %v338, 0.0
    %v369 = vrot.slane %v368, 4
    %v370 = vadd.f32 %v368, %v369
    %v371 = vrot.slane %v370, 2
    %v372 = vadd.f32 %v370, %v371
    %v373 = vrot.slane %v372, 1
    %v374 = vadd.f32 %v372, %v373
    %v375 = vsel %vm266, %v340, 0.0
    %v376 = vrot.slane %v375, 4
    %v377 = vadd.f32 %v375, %v376
    %v378 = vrot.slane %v377, 2
    %v379 = vadd.f32 %v377, %v378
    %v380 = vrot.slane %v379, 1
    %v381 = vadd.f32 %v379, %v380
    %v382 = vsel %vm266, %v342, 0.0
    %v383 = vrot.slane %v382, 4
    %v384 = vadd.f32 %v382, %v383
    %v385 = vrot.slane %v384, 2
    %v386 = vadd.f32 %v384, %v385
    %v387 = vrot.slane %v386, 1
    %v388 = vadd.f32 %v386, %v387
    %v389 = vsel %vm266, %v344, 0.0
    %v390 = vrot.slane %v389, 4
    %v391 = vadd.f32 %v389, %v390
    %v392 = vrot.slane %v391, 2
    %v393 = vadd.f32 %v391, %v392
    %v394 = vrot.slane %v393, 1
    %v395 = vadd.f32 %v393, %v394
    %v396 = vsel %vm266, %v346, 0.0
    %v397 = vrot.slane %v396, 4
    %v398 = vadd.f32 %v396, %v397
    %v399 = vrot.slane %v398, 2
    %v400 = vadd.f32 %v398, %v399
    %v401 = vrot.slane %v400, 1
    %v402 = vadd.f32 %v400, %v401
    %v403 = vld [vmem:[%s4] sm:$0xf]
    %412 = vrot.lane.b32.xlu0 %v332, 96
    %v413 = vpop.permute.xlu0 %412
    %414 = vrot.lane.b32.xlu0 %v334, 96
    %v415 = vpop.permute.xlu0 %414
    %416 = vrot.lane.b32.xlu0 %v336, 96
    %v417 = vpop.permute.xlu0 %416
    %418 = vrot.lane.b32.xlu0 %v338, 96
    %v419 = vpop.permute.xlu0 %418
    %420 = vrot.lane.b32.xlu0 %v340, 96
    %v421 = vpop.permute.xlu0 %420
    %422 = vrot.lane.b32.xlu0 %v342, 96
    %v423 = vpop.permute.xlu0 %422
    %424 = vrot.lane.b32.xlu0 %v344, 96
    %v425 = vpop.permute.xlu0 %424
    %426 = vrot.lane.b32.xlu0 %v346, 96
    %v427 = vpop.permute.xlu0 %426
    %vm428 = vcmask 31744
    %v429 = vsel %vm428, %v413, 0
    %v431 = vsel %vm428, %v415, 0
    %v433 = vsel %vm428, %v417, 0
    %v435 = vsel %vm428, %v419, 0
    %v437 = vsel %vm428, %v421, 0
    %v439 = vsel %vm428, %v423, 0
    %v441 = vsel %vm428, %v425, 0
    %v443 = vsel %vm428, %v427, 0
    %vm445 = vcmask 1043456
    %v447 = vsel %vm445, %v403, 0
    %449 = vmatprep.subr.mxu0 0.0
    %450 = vmatpush1.msra.mxu0 %v447
    %451 = vmatprep.subr.mxu0 0.0
    %452 = vmatpush1.msra.mxu0 0.0
    %453 = vmatprep.subr.mxu0 0.0
    %454 = vmatpush1.msra.mxu0 0.0
    %455 = vmatprep.subr.mxu0 0.0
    %456 = vmatpush1.msra.mxu0 0.0
    %457 = vmatprep.subr.mxu0 0.0
    %458 = vmatpush1.msra.mxu0 0.0
    %459 = vmatprep.subr.mxu0 0.0
    %460 = vmatpush1.msra.mxu0 0.0
    %461 = vmatprep.subr.mxu0 0.0
    %462 = vmatpush1.msra.mxu0 0.0
    %463 = vmatprep.subr.mxu0 0.0
    %464 = vmatpush1.msra.mxu0 0.0
    %465 = vmatprep.subr.mxu0 0.0
    %466 = vmatpush1.msra.mxu0 0.0
    %467 = vmatprep.subr.mxu0 0.0
    %468 = vmatpush1.msra.mxu0 0.0
    %469 = vmatprep.subr.mxu0 0.0
    %470 = vmatpush1.msra.mxu0 0.0
    %471 = vmatprep.subr.mxu0 0.0
    %472 = vmatpush1.msra.mxu0 0.0
    %473 = vmatprep.subr.mxu0 0.0
    %474 = vmatpush1.msra.mxu0 0.0
    %475 = vmatprep.subr.mxu0 0.0
    %476 = vmatpush1.msra.mxu0 0.0
    %477 = vmatprep.subr.mxu0 0.0
    %478 = vmatpush1.msra.mxu0 0.0
    %479 = vmatprep.subr.mxu0 0.0
    %480 = vmatpush1.msra.mxu0 0.0
    %481 = vmatprep.subr.mxu0 0.0
    %482 = vmatpush1.msra.mxu0 0.0
    %483 = vmatprep.subr.mxu0 0.0
    %484 = vmatpush1.msra.mxu0 0.0
    %485 = vmatprep.subr.mxu0 0.0
    %486 = vmatpush1.msra.mxu0 0.0
    %487 = vmatprep.subr.mxu0 0.0
    %488 = vmatpush1.msra.mxu0 0.0
    %489 = vmatprep.subr.mxu0 0.0
    %490 = vmatpush1.msra.mxu0 0.0
    %491 = vmatprep.subr.mxu0 0.0
    %492 = vmatpush1.msra.mxu0 0.0
    %493 = vmatprep.subr.mxu0 0.0
    %494 = vmatpush1.msra.mxu0 0.0
    %495 = vmatprep.subr.mxu0 0.0
    %496 = vmatpush1.msra.mxu0 0.0
    %497 = vmatprep.subr.mxu0 0.0
    %498 = vmatpush1.msra.mxu0 0.0
    %499 = vmatprep.subr.mxu0 0.0
    %500 = vmatpush1.msra.mxu0 0.0
    %501 = vmatprep.subr.mxu0 0.0
    %502 = vmatpush1.msra.mxu0 0.0
    %503 = vmatprep.subr.mxu0 0.0
    %504 = vmatpush1.msra.mxu0 0.0
    %505 = vmatprep.subr.mxu0 0.0
    %506 = vmatpush1.msra.mxu0 0.0
    %507 = vmatprep.subr.mxu0 0.0
    %508 = vmatpush1.msra.mxu0 0.0
    %509 = vmatprep.subr.mxu0 0.0
    %510 = vmatpush1.msra.mxu0 0.0
    %511 = vmatprep.subr.mxu0 0.0
    %512 = vmatpush1.msra.mxu0 0.0
    %513 = vmatprep.mubr.f32.mxu0 0.0
    %514 = vmatmul.mubr.f32.gmra.mrb[0].mxu0 %v429
    %v515 = vpop.f32.mrb[0].mxu0
    %v516 = vadd.f32 0.0, %v515
    %v517 = vpop.f32.mrb[0].mxu0
    %518 = vmatprep.mubr.f32.mxu0 0.0
    %519 = vmatmul.mubr.f32.gmra.mrb[0].mxu0 %v431
    %v520 = vpop.f32.mrb[0].mxu0
    %v521 = vadd.f32 0.0, %v520
    %v522 = vpop.f32.mrb[0].mxu0
    %523 = vmatprep.mubr.f32.mxu0 0.0
    %524 = vmatmul.mubr.f32.gmra.mrb[0].mxu0 %v433
    %v525 = vpop.f32.mrb[0].mxu0
    %v526 = vadd.f32 0.0, %v525
    %v527 = vpop.f32.mrb[0].mxu0
    %528 = vmatprep.mubr.f32.mxu0 0.0
    %529 = vmatmul.mubr.f32.gmra.mrb[0].mxu0 %v435
    %v530 = vpop.f32.mrb[0].mxu0
    %v531 = vadd.f32 0.0, %v530
    %v532 = vpop.f32.mrb[0].mxu0
    %533 = vmatprep.mubr.f32.mxu0 0.0
    %534 = vmatmul.mubr.f32.gmra.mrb[0].mxu0 %v437
    %v535 = vpop.f32.mrb[0].mxu0
    %v536 = vadd.f32 0.0, %v535
    %v537 = vpop.f32.mrb[0].mxu0
    %538 = vmatprep.mubr.f32.mxu0 0.0
    %539 = vmatmul.mubr.f32.gmra.mrb[0].mxu0 %v439
    %v540 = vpop.f32.mrb[0].mxu0
    %v541 = vadd.f32 0.0, %v540
    %v542 = vpop.f32.mrb[0].mxu0
    %543 = vmatprep.mubr.f32.mxu0 0.0
    %544 = vmatmul.mubr.f32.gmra.mrb[0].mxu0 %v441
    %v545 = vpop.f32.mrb[0].mxu0
    %v546 = vadd.f32 0.0, %v545
    %v547 = vpop.f32.mrb[0].mxu0
    %548 = vmatprep.mubr.f32.mxu0 0.0
    %549 = vmatmul.mubr.f32.gmra.mrb[0].mxu0 %v443
    %v550 = vpop.f32.mrb[0].mxu0
    %v551 = vadd.f32 0.0, %v550
    %v552 = vpop.f32.mrb[0].mxu0
    %553 = vdwg.mxu0
    %v554 = vmul.f32 %v516, %v172
    %v555 = vmul.f32 %v521, %v177
    %v556 = vmul.f32 %v526, %v182
    %v557 = vmul.f32 %v531, %v187
    %v558 = vmul.f32 %v536, %v192
    %v559 = vmul.f32 %v541, %v197
    %v560 = vmul.f32 %v546, %v202
    %v561 = vmul.f32 %v551, %v207
    %v562 = vsel %vm80, %v554, 0.0
    %v563 = vrot.slane %v562, 4
    %v564 = vadd.f32 %v562, %v563
    %v565 = vrot.slane %v564, 2
    %v566 = vadd.f32 %v564, %v565
    %v567 = vrot.slane %v566, 1
    %v568 = vadd.f32 %v566, %v567
    %v569 = vsel %vm80, %v555, 0.0
    %v570 = vrot.slane %v569, 4
    %v571 = vadd.f32 %v569, %v570
    %v572 = vrot.slane %v571, 2
    %v573 = vadd.f32 %v571, %v572
    %v574 = vrot.slane %v573, 1
    %v575 = vadd.f32 %v573, %v574
    %v576 = vsel %vm80, %v556, 0.0
    %v577 = vrot.slane %v576, 4
    %v578 = vadd.f32 %v576, %v577
    %v579 = vrot.slane %v578, 2
    %v580 = vadd.f32 %v578, %v579
    %v581 = vrot.slane %v580, 1
    %v582 = vadd.f32 %v580, %v581
    %v583 = vsel %vm80, %v557, 0.0
    %v584 = vrot.slane %v583, 4
    %v585 = vadd.f32 %v583, %v584
    %v586 = vrot.slane %v585, 2
    %v587 = vadd.f32 %v585, %v586
    %v588 = vrot.slane %v587, 1
    %v589 = vadd.f32 %v587, %v588
    %v590 = vsel %vm80, %v558, 0.0
    %v591 = vrot.slane %v590, 4
    %v592 = vadd.f32 %v590, %v591
    %v593 = vrot.slane %v592, 2
    %v594 = vadd.f32 %v592, %v593
    %v595 = vrot.slane %v594, 1
    %v596 = vadd.f32 %v594, %v595
    %v597 = vsel %vm80, %v559, 0.0
    %v598 = vrot.slane %v597, 4
    %v599 = vadd.f32 %v597, %v598
    %v600 = vrot.slane %v599, 2
    %v601 = vadd.f32 %v599, %v600
    %v602 = vrot.slane %v601, 1
    %v603 = vadd.f32 %v601, %v602
    %v604 = vsel %vm80, %v560, 0.0
    %v605 = vrot.slane %v604, 4
    %v606 = vadd.f32 %v604, %v605
    %v607 = vrot.slane %v606, 2
    %v608 = vadd.f32 %v606, %v607
    %v609 = vrot.slane %v608, 1
    %v610 = vadd.f32 %v608, %v609
    %v611 = vsel %vm80, %v561, 0.0
    %v612 = vrot.slane %v611, 4
    %v613 = vadd.f32 %v611, %v612
    %v614 = vrot.slane %v613, 2
    %v615 = vadd.f32 %v613, %v614
    %v616 = vrot.slane %v615, 1
    %v617 = vadd.f32 %v615, %v616
    %vm626 = vcmask 1041409
    %v627 = vsel %vm626, %v360, %v353
    %vm628 = vcmask 1042434
    %v629 = vsel %vm628, %v367, %v627
    %vm630 = vcmask 1043459
    %v631 = vsel %vm630, %v374, %v629
    %vm632 = vcmask 1044484
    %v633 = vsel %vm632, %v381, %v631
    %vm634 = vcmask 1045509
    %v635 = vsel %vm634, %v388, %v633
    %vm636 = vcmask 1046534
    %v637 = vsel %vm636, %v395, %v635
    %vm638 = vcmask 1047559
    %v639 = vsel %vm638, %v402, %v637
    %640 = vrot.lane.b32.xlu0 %v639, 96
    %v641 = vpop.permute.xlu0 %640
    %v642 = vsel %vm428, %v641, 0
    %644 = vmatprep.subr.mxu0 0.0
    %645 = vmatpush1.msra.mxu0 %v447
    %646 = vmatprep.subr.mxu0 0.0
    %647 = vmatpush1.msra.mxu0 0.0
    %648 = vmatprep.subr.mxu0 0.0
    %649 = vmatpush1.msra.mxu0 0.0
    %650 = vmatprep.subr.mxu0 0.0
    %651 = vmatpush1.msra.mxu0 0.0
    %652 = vmatprep.subr.mxu0 0.0
    %653 = vmatpush1.msra.mxu0 0.0
    %654 = vmatprep.subr.mxu0 0.0
    %655 = vmatpush1.msra.mxu0 0.0
    %656 = vmatprep.subr.mxu0 0.0
    %657 = vmatpush1.msra.mxu0 0.0
    %658 = vmatprep.subr.mxu0 0.0
    %659 = vmatpush1.msra.mxu0 0.0
    %660 = vmatprep.subr.mxu0 0.0
    %661 = vmatpush1.msra.mxu0 0.0
    %662 = vmatprep.subr.mxu0 0.0
    %663 = vmatpush1.msra.mxu0 0.0
    %664 = vmatprep.subr.mxu0 0.0
    %665 = vmatpush1.msra.mxu0 0.0
    %666 = vmatprep.subr.mxu0 0.0
    %667 = vmatpush1.msra.mxu0 0.0
    %668 = vmatprep.subr.mxu0 0.0
    %669 = vmatpush1.msra.mxu0 0.0
    %670 = vmatprep.subr.mxu0 0.0
    %671 = vmatpush1.msra.mxu0 0.0
    %672 = vmatprep.subr.mxu0 0.0
    %673 = vmatpush1.msra.mxu0 0.0
    %674 = vmatprep.subr.mxu0 0.0
    %675 = vmatpush1.msra.mxu0 0.0
    %676 = vmatprep.subr.mxu0 0.0
    %677 = vmatpush1.msra.mxu0 0.0
    %678 = vmatprep.subr.mxu0 0.0
    %679 = vmatpush1.msra.mxu0 0.0
    %680 = vmatprep.subr.mxu0 0.0
    %681 = vmatpush1.msra.mxu0 0.0
    %682 = vmatprep.subr.mxu0 0.0
    %683 = vmatpush1.msra.mxu0 0.0
    %684 = vmatprep.subr.mxu0 0.0
    %685 = vmatpush1.msra.mxu0 0.0
    %686 = vmatprep.subr.mxu0 0.0
    %687 = vmatpush1.msra.mxu0 0.0
    %688 = vmatprep.subr.mxu0 0.0
    %689 = vmatpush1.msra.mxu0 0.0
    %690 = vmatprep.subr.mxu0 0.0
    %691 = vmatpush1.msra.mxu0 0.0
    %692 = vmatprep.subr.mxu0 0.0
    %693 = vmatpush1.msra.mxu0 0.0
    %694 = vmatprep.subr.mxu0 0.0
    %695 = vmatpush1.msra.mxu0 0.0
    %696 = vmatprep.subr.mxu0 0.0
    %697 = vmatpush1.msra.mxu0 0.0
    %698 = vmatprep.subr.mxu0 0.0
    %699 = vmatpush1.msra.mxu0 0.0
    %700 = vmatprep.subr.mxu0 0.0
    %701 = vmatpush1.msra.mxu0 0.0
    %702 = vmatprep.subr.mxu0 0.0
    %703 = vmatpush1.msra.mxu0 0.0
    %704 = vmatprep.subr.mxu0 0.0
    %705 = vmatpush1.msra.mxu0 0.0
    %706 = vmatprep.subr.mxu0 0.0
    %707 = vmatpush1.msra.mxu0 0.0
    %708 = vmatprep.mubr.f32.mxu0 0.0
    %709 = vmatmul.mubr.f32.gmra.mrb[0].mxu0 %v642
    %v710 = vpop.f32.mrb[0].mxu0
    %v711 = vadd.f32 0.0, %v710
    %v712 = vpop.f32.mrb[0].mxu0
    %713 = vdwg.mxu0
    %v714 = vrcp.pop %v711
    %v716 = vrot.slane %v714, 1
    %v717 = vrot.slane %v714, 2
    %v718 = vrot.slane %v714, 3
    %v719 = vrot.slane %v714, 4
    %v720 = vrot.slane %v714, 5
    %v721 = vrot.slane %v714, 6
    %v722 = vrot.slane %v714, 7
    %v731 = vmul.f32 %v568, %v714
    %v732 = vmul.f32 %v575, %v716
    %v733 = vmul.f32 %v582, %v717
    %v734 = vmul.f32 %v589, %v718
    %v735 = vmul.f32 %v596, %v719
    %v736 = vmul.f32 %v603, %v720
    %v737 = vmul.f32 %v610, %v721
    %v738 = vmul.f32 %v617, %v722
    %v739 = vld [vmem:[#allocation5] sm:$0xff]
    %v740 = vld [vmem:[#allocation5 + $0x8] sm:$0xff]
    %v741 = vld [vmem:[#allocation5 + $0x10] sm:$0xff]
    %v742 = vld [vmem:[#allocation5 + $0x18] sm:$0xff]
    %v743 = vld [vmem:[%s6] sm:$0x1]
    %v745 = vlaneseq
    %v746 = vshrl.u32 %v745, 7
    %v747 = vsub.s32 0, %v746
    %v748 = vrot.slane %v743, %v747
    %v758 = vrot.slane %v732, 7
    %v759 = vsel %vm626, %v758, %v731
    %v760 = vrot.slane %v733, 6
    %v761 = vsel %vm628, %v760, %v759
    %v762 = vrot.slane %v734, 5
    %v763 = vsel %vm630, %v762, %v761
    %v764 = vrot.slane %v735, 4
    %v765 = vsel %vm632, %v764, %v763
    %v766 = vrot.slane %v736, 3
    %v767 = vsel %vm634, %v766, %v765
    %v768 = vrot.slane %v737, 2
    %v769 = vsel %vm636, %v768, %v767
    %v770 = vrot.slane %v738, 1
    %v771 = vsel %vm638, %v770, %v769
    %v772 = vsel %vm80, %v771, 0
    %774 = vmatprep.subr.mxu0 0.0
    %775 = vmatpush1.msra.mxu0 %v739
    %776 = vmatprep.subr.mxu0 0.0
    %777 = vmatpush1.msra.mxu0 %v740
    %778 = vmatprep.subr.mxu0 0.0
    %779 = vmatpush1.msra.mxu0 %v741
    %780 = vmatprep.subr.mxu0 0.0
    %781 = vmatpush1.msra.mxu0 %v742
    %782 = vmatprep.subr.mxu0 0.0
    %783 = vmatpush1.msra.mxu0 0.0
    %784 = vmatprep.subr.mxu0 0.0
    %785 = vmatpush1.msra.mxu0 0.0
    %786 = vmatprep.subr.mxu0 0.0
    %787 = vmatpush1.msra.mxu0 0.0
    %788 = vmatprep.subr.mxu0 0.0
    %789 = vmatpush1.msra.mxu0 0.0
    %790 = vmatprep.subr.mxu0 0.0
    %791 = vmatpush1.msra.mxu0 0.0
    %792 = vmatprep.subr.mxu0 0.0
    %793 = vmatpush1.msra.mxu0 0.0
    %794 = vmatprep.subr.mxu0 0.0
    %795 = vmatpush1.msra.mxu0 0.0
    %796 = vmatprep.subr.mxu0 0.0
    %797 = vmatpush1.msra.mxu0 0.0
    %798 = vmatprep.subr.mxu0 0.0
    %799 = vmatpush1.msra.mxu0 0.0
    %800 = vmatprep.subr.mxu0 0.0
    %801 = vmatpush1.msra.mxu0 0.0
    %802 = vmatprep.subr.mxu0 0.0
    %803 = vmatpush1.msra.mxu0 0.0
    %804 = vmatprep.subr.mxu0 0.0
    %805 = vmatpush1.msra.mxu0 0.0
    %806 = vmatprep.subr.mxu0 0.0
    %807 = vmatpush1.msra.mxu0 0.0
    %808 = vmatprep.subr.mxu0 0.0
    %809 = vmatpush1.msra.mxu0 0.0
    %810 = vmatprep.subr.mxu0 0.0
    %811 = vmatpush1.msra.mxu0 0.0
    %812 = vmatprep.subr.mxu0 0.0
    %813 = vmatpush1.msra.mxu0 0.0
    %814 = vmatprep.subr.mxu0 0.0
    %815 = vmatpush1.msra.mxu0 0.0
    %816 = vmatprep.subr.mxu0 0.0
    %817 = vmatpush1.msra.mxu0 0.0
    %818 = vmatprep.subr.mxu0 0.0
    %819 = vmatpush1.msra.mxu0 0.0
    %820 = vmatprep.subr.mxu0 0.0
    %821 = vmatpush1.msra.mxu0 0.0
    %822 = vmatprep.subr.mxu0 0.0
    %823 = vmatpush1.msra.mxu0 0.0
    %824 = vmatprep.subr.mxu0 0.0
    %825 = vmatpush1.msra.mxu0 0.0
    %826 = vmatprep.subr.mxu0 0.0
    %827 = vmatpush1.msra.mxu0 0.0
    %828 = vmatprep.subr.mxu0 0.0
    %829 = vmatpush1.msra.mxu0 0.0
    %830 = vmatprep.subr.mxu0 0.0
    %831 = vmatpush1.msra.mxu0 0.0
    %832 = vmatprep.subr.mxu0 0.0
    %833 = vmatpush1.msra.mxu0 0.0
    %834 = vmatprep.subr.mxu0 0.0
    %835 = vmatpush1.msra.mxu0 0.0
    %836 = vmatprep.subr.mxu0 0.0
    %837 = vmatpush1.msra.mxu0 0.0
    %838 = vmatprep.mubr.f32.mxu0 0.0
    %839 = vmatmul.mubr.f32.gmra.mrb[0].mxu0 %v772
    %v840 = vpop.f32.mrb[0].mxu0
    %v841 = vadd.f32 %v748, %v840
    %v842 = vpop.f32.mrb[0].mxu0
    %843 = vdwg.mxu0
    %v844 = vsel %vm80, %v841, 0.0
    %845 = vadd.xlane.f32.xlu0 %v844
    %v846 = vpop.xlane.xlu0 %845
    %v847 = vrcp.pop 32.0
    %v848 = vmul.f32 %v846, %v847
    %v849 = vsub.f32 %v841, %v848
    %v850 = vmul.f32 %v849, %v849
    %v851 = vsel %vm80, %v850, 0.0
    %852 = vadd.xlane.f32.xlu0 %v851
    %v853 = vpop.xlane.xlu0 %852
    %v854 = vmul.f32 %v853, %v847
    %v855 = vadd.f32 %v854, 1e-05
    %v856 = vrsqrt.pop %v855
    %v857 = vmul.f32 %v849, %v856
    %v858 = vld [vmem:[%s7] sm:$0x1]
    %v860 = vlaneseq
    %v861 = vshrl.u32 %v860, 7
    %v862 = vsub.s32 0, %v861
    %v863 = vrot.slane %v858, %v862
    %v865 = vmul.f32 %v857, %v863
    %v866 = vld [vmem:[%s8] sm:$0x1]
    %v868 = vlaneseq
    %v869 = vshrl.u32 %v868, 7
    %v870 = vsub.s32 0, %v869
    %v871 = vrot.slane %v866, %v870
    %v873 = vadd.f32 %v865, %v871
    %874 = vst.msk [vmem:[#allocation7] sm:$0xff] %vm80, %v873
    // Predicated region
    $region46: #{tpu_custom_call.1} parent=1 // pred_check
      _
    $region47: #{tpu_custom_call.1} parent=1 // pred_check_branch
      %876 = sbr.rel (0) target = $region49
    $region48: #{tpu_custom_call.1} parent=1 // pred_region
      %s878 = ssub.s32 128, 128
      %879 = vsyncadd [#allocation4], %s878
      %s881 = sshll.u32 [#allocation7], 4
      %s882 = int_to_ptr.vmem [resolvable:$true] %s881
      %884 = dma.vmem_to_hbm [thread:$0]  %s882, 128, %s9, [#allocation4]
    $region49: #{tpu_custom_call.1} parent=1 // pred_fallthru
      _
    // Predicated region
    $region50: #{tpu_custom_call.1} parent=1 // pred_check
      _
    $region51: #{tpu_custom_call.1} parent=1 // pred_check_branch
      %886 = sbr.rel (0) target = $region53
    $region52: #{tpu_custom_call.1} parent=1 // pred_region
      %887 = dma.done [#allocation4], 128
    $region53: #{tpu_custom_call.1} parent=1 // pred_fallthru
      _
    %888 = vsyncpa [#allocation3], 1
    %889 = vsyncpa [#allocation6], 1
    %890 = vsyncpa [#allocation4], 1

</llo_original>
